<compile_context>
chip_gen: v6e
topology: v6e:2x2x1
jax: 0.10.0
libtpu: 0.0.40
codegen_flags: <defaults>
</compile_context>

<pallas_src>
import math
import functools

import jax
import jax.numpy as jnp
from jax.experimental import pallas as pl
from jax.experimental.pallas import tpu as pltpu


def _layer_norm(x, gamma, beta, eps):
    mean = jnp.mean(x, axis=-1, keepdims=True)
    xc = x - mean
    var = jnp.mean(xc * xc, axis=-1, keepdims=True)
    return xc * jax.lax.rsqrt(var + eps) * gamma + beta


def msa_kernel(x_ref, gamma_ref, beta_ref,
               wq_ref, bq_ref, wk_ref, bk_ref, wv_ref, bv_ref,
               wo_ref, bo_ref, o_ref, *, num_heads, eps, tq):
    # x_ref block: (1, S, E) — full sequence (needed for K/V); o_ref: (1, tq, E).
    S, E = x_ref.shape[1], x_ref.shape[2]
    H = num_heads
    bf16 = jnp.bfloat16

    gamma = gamma_ref[...]                       # (1, E)
    beta = beta_ref[...]                         # (1, E)

    # LayerNorm over the full sequence in f32 (keys/values need every row).
    x_full = x_ref[0]                            # (S, E)
    x_ln = _layer_norm(x_full, gamma, beta, eps)
    x_ln_bf = x_ln.astype(bf16)

    # Query rows owned by this grid step (LayerNorm is per-row, so recomputing
    # it on the slice is exact and avoids a dynamic value-slice).
    if tq == S:
        q_ln_bf = x_ln_bf
    else:
        qi = pl.program_id(1)
        start = pl.multiple_of(qi * tq, tq)
        q_rows = x_ref[0, pl.ds(start, tq), :]   # (tq, E)
        q_ln_bf = _layer_norm(q_rows, gamma, beta, eps).astype(bf16)

    # Lane-dense f32 accumulator for the (already output-projected) result.
    acc = jnp.zeros((tq, E), jnp.float32)

    for h in range(H):                           # static unroll; H is small
        # Head-major weight slabs: leading-axis indexing only, no lane slices.
        q_h = (jnp.dot(q_ln_bf, wq_ref[h],       # 1/sqrt(hd) folded into wq/bq
                       preferred_element_type=jnp.float32) + bq_ref[h])  # (tq, hd)
        k_h = (jnp.dot(x_ln_bf, wk_ref[h],
                       preferred_element_type=jnp.float32) + bk_ref[h])  # (S, hd)
        v_h = (jnp.dot(x_ln_bf, wv_ref[h],
                       preferred_element_type=jnp.float32) + bv_ref[h])  # (S, hd)

        # Scores: contract the last dims directly (no kh.T / XLU transpose).
        s = jax.lax.dot_general(
            q_h.astype(bf16), k_h.astype(bf16),
            (((1,), (1,)), ((), ())),
            preferred_element_type=jnp.float32)                          # (tq, S)

        # Numerically-stable softmax in f32; reciprocal on the EUP slot.
        m = jnp.max(s, axis=-1, keepdims=True)
        p = jnp.exp(s - m)
        denom = jnp.sum(p, axis=-1, keepdims=True)
        p = p * pl.reciprocal(denom, approx=True)

        o_h = jnp.dot(p.astype(bf16), v_h.astype(bf16),
                      preferred_element_type=jnp.float32)                # (tq, hd)

        # Fold this head's slice of the output projection — keeps the
        # accumulator lane-dense and eliminates the per-head concat.
        acc = acc + jnp.dot(o_h.astype(bf16), wo_ref[h],
                            preferred_element_type=jnp.float32)          # (tq, E)

    o_ref[0] = (acc + bo_ref[...]).astype(o_ref.dtype)


def msa_forward(x, params, *, num_heads, eps=1e-5):
    """x: (B, S, E) f32. params: head-major weights from prepare_params()."""
    B, S, E = x.shape
    H = num_heads
    hd = E // H

    # Query tile: 128 rows when the sequence allows it, otherwise whole S.
    tq = 128 if (S > 128 and S % 128 == 0) else S
    n_q = S // tq

    kernel = functools.partial(msa_kernel, num_heads=H, eps=eps, tq=tq)

    rep3 = lambda b, q: (0, 0, 0)
    rep2 = lambda b, q: (0, 0)

    return pl.pallas_call(
        kernel,
        out_shape=jax.ShapeDtypeStruct((B, S, E), x.dtype),
        grid_spec=pltpu.PrefetchScalarGridSpec(
            num_scalar_prefetch=0,
            grid=(B, n_q),
            in_specs=[
                pl.BlockSpec((1, S, E), lambda b, q: (b, 0, 0)),  # x (full seq)
                pl.BlockSpec((1, E), rep2),                       # ln gamma
                pl.BlockSpec((1, E), rep2),                       # ln beta
                pl.BlockSpec((H, E, hd), rep3),                   # w_q (scaled, bf16)
                pl.BlockSpec((H, 1, hd), rep3),                   # b_q (scaled)
                pl.BlockSpec((H, E, hd), rep3),                   # w_k (bf16)
                pl.BlockSpec((H, 1, hd), rep3),                   # b_k
                pl.BlockSpec((H, E, hd), rep3),                   # w_v (bf16)
                pl.BlockSpec((H, 1, hd), rep3),                   # b_v
                pl.BlockSpec((H, hd, E), rep3),                   # w_out (bf16)
                pl.BlockSpec((1, E), rep2),                       # b_out
            ],
            out_specs=pl.BlockSpec((1, tq, E), lambda b, q: (b, q, 0)),
        ),
        compiler_params=pltpu.CompilerParams(
            # Both axes independent -> shards across the 2 TCs on v7x.
            dimension_semantics=("parallel", "parallel")),
    )(x, params["ln_gamma"], params["ln_beta"],
      params["wq"], params["bq"], params["wk"], params["bk"],
      params["wv"], params["bv"], params["wo"], params["bo"])


def prepare_params(in_proj_w, in_proj_b, out_proj_w, out_proj_b,
                   ln_gamma, ln_beta, *, num_heads):
    """Convert PyTorch-layout nn.MultiheadAttention weights to the head-major,
    bf16, scale-folded layout consumed by the kernel."""
    E = out_proj_w.shape[0]
    H = num_heads
    hd = E // H
    scale = 1.0 / math.sqrt(hd)

    wq_t = in_proj_w[:E].T            # (E, E): kernel computes x @ W
    wk_t = in_proj_w[E:2 * E].T
    wv_t = in_proj_w[2 * E:].T
    bq, bk, bv = in_proj_b[:E], in_proj_b[E:2 * E], in_proj_b[2 * E:]

    def head_major(w_t):              # (E_in, E_out) -> (H, E_in, hd)
        return w_t.reshape(E, H, hd).transpose(1, 0, 2)

    return {
        "ln_gamma": ln_gamma.reshape(1, E).astype(jnp.float32),
        "ln_beta": ln_beta.reshape(1, E).astype(jnp.float32),
        "wq": (head_major(wq_t) * scale).astype(jnp.bfloat16),
        "bq": (bq.reshape(H, 1, hd) * scale).astype(jnp.float32),
        "wk": head_major(wk_t).astype(jnp.bfloat16),
        "bk": bk.reshape(H, 1, hd).astype(jnp.float32),
        "wv": head_major(wv_t).astype(jnp.bfloat16),
        "bv": bv.reshape(H, 1, hd).astype(jnp.float32),
        # out = concat_heads @ out_proj_w.T + b  ->  (H, hd, E) head slabs
        "wo": out_proj_w.T.reshape(H, hd, E).astype(jnp.bfloat16),
        "bo": out_proj_b.reshape(1, E).astype(jnp.float32),
    }


def msa_reference(x, in_proj_w, in_proj_b, out_proj_w, out_proj_b,
                  ln_gamma, ln_beta, *, num_heads, eps=1e-5):
    """Pure-JAX f32 reference mirroring PyTorch LayerNorm + MultiheadAttention."""
    B, S, E = x.shape
    hd = E // num_heads
    mean = jnp.mean(x, axis=-1, keepdims=True)
    var = jnp.mean((x - mean) ** 2, axis=-1, keepdims=True)
    x_ln = (x - mean) / jnp.sqrt(var + eps) * ln_gamma + ln_beta

    qkv = x_ln @ in_proj_w.T + in_proj_b
    q, k, v = jnp.split(qkv, 3, axis=-1)

    def split_heads(t):
        return t.reshape(B, S, num_heads, hd).transpose(0, 2, 1, 3)

    qh, kh, vh = split_heads(q), split_heads(k), split_heads(v)
    s = jnp.einsum("bhqd,bhkd->bhqk", qh, kh) / math.sqrt(hd)
    p = jax.nn.softmax(s, axis=-1)
    o = jnp.einsum("bhqk,bhkd->bhqd", p, vh)
    o = o.transpose(0, 2, 1, 3).reshape(B, S, E)
    return o @ out_proj_w.T + out_proj_b


if __name__ == "__main__":
    B, S, E, H = 2, 8, 32, 4   # batch, seq, embedding_dim, num_heads (E % H == 0)
    key = jax.random.PRNGKey(0)
    kx, k1, k2, k3, k4 = jax.random.split(key, 5)
    x = jax.random.normal(kx, (B, S, E), jnp.float32)

    lim = 1.0 / math.sqrt(E)
    in_proj_w = jax.random.uniform(k1, (3 * E, E), jnp.float32, -lim, lim)
    in_proj_b = jax.random.uniform(k2, (3 * E,), jnp.float32, -lim, lim)
    out_proj_w = jax.random.uniform(k3, (E, E), jnp.float32, -lim, lim)
    out_proj_b = jax.random.uniform(k4, (E,), jnp.float32, -lim, lim)
    ln_gamma = jnp.ones((E,), jnp.float32)
    ln_beta = jnp.zeros((E,), jnp.float32)

    params = prepare_params(in_proj_w, in_proj_b, out_proj_w, out_proj_b,
                            ln_gamma, ln_beta, num_heads=H)

    out = msa_forward(x, params, num_heads=H)
    out = jax.block_until_ready(out)

    ref = msa_reference(x, in_proj_w, in_proj_b, out_proj_w, out_proj_b,
                        ln_gamma, ln_beta, num_heads=H)
    assert out.shape == (B, S, E)
    err = jnp.max(jnp.abs(out - ref))
    # bf16 matmuls (f32 accumulation) vs pure-f32 reference -> loosened tol.
    assert jnp.allclose(out, ref, atol=2e-2, rtol=2e-2), f"max abs err {err}"
    print("KERNEL_OK")
</pallas_src>

<mosaic_0001>
module attributes {stable_mosaic.version = 11 : i64} {
  func.func @msa_kernel(%arg0: i32, %arg1: i32, %arg2: memref<1x8x32xf32, #tpu.memory_space<vmem>>, %arg3: memref<1x32xf32, #tpu.memory_space<vmem>>, %arg4: memref<1x32xf32, #tpu.memory_space<vmem>>, %arg5: memref<4x32x8xbf16, #tpu.memory_space<vmem>>, %arg6: memref<4x1x8xf32, #tpu.memory_space<vmem>>, %arg7: memref<4x32x8xbf16, #tpu.memory_space<vmem>>, %arg8: memref<4x1x8xf32, #tpu.memory_space<vmem>>, %arg9: memref<4x32x8xbf16, #tpu.memory_space<vmem>>, %arg10: memref<4x1x8xf32, #tpu.memory_space<vmem>>, %arg11: memref<4x8x32xbf16, #tpu.memory_space<vmem>>, %arg12: memref<1x32xf32, #tpu.memory_space<vmem>>, %arg13: memref<1x8x32xf32, #tpu.memory_space<vmem>>) attributes {dimension_semantics = [#tpu.dimension_semantics<parallel>, #tpu.dimension_semantics<parallel>], iteration_bounds = array<i64: 2, 1>, scalar_prefetch = 0 : i64, scratch_operands = 0 : i64, tpu.core_type = #tpu.core_type<tc>, window_params = [{transform_indices = @transform_0, window_bounds = array<i64: 1, 8, 32>}, {pipeline_mode = #tpu.pipeline_mode<synchronous>, transform_indices = @transform_1, window_bounds = array<i64: 1, 32>}, {pipeline_mode = #tpu.pipeline_mode<synchronous>, transform_indices = @transform_2, window_bounds = array<i64: 1, 32>}, {pipeline_mode = #tpu.pipeline_mode<synchronous>, transform_indices = @transform_3, window_bounds = array<i64: 4, 32, 8>}, {pipeline_mode = #tpu.pipeline_mode<synchronous>, transform_indices = @transform_4, window_bounds = array<i64: 4, 1, 8>}, {pipeline_mode = #tpu.pipeline_mode<synchronous>, transform_indices = @transform_5, window_bounds = array<i64: 4, 32, 8>}, {pipeline_mode = #tpu.pipeline_mode<synchronous>, transform_indices = @transform_6, window_bounds = array<i64: 4, 1, 8>}, {pipeline_mode = #tpu.pipeline_mode<synchronous>, transform_indices = @transform_7, window_bounds = array<i64: 4, 32, 8>}, {pipeline_mode = #tpu.pipeline_mode<synchronous>, transform_indices = @transform_8, window_bounds = array<i64: 4, 1, 8>}, {pipeline_mode = #tpu.pipeline_mode<synchronous>, transform_indices = @transform_9, window_bounds = array<i64: 4, 8, 32>}, {pipeline_mode = #tpu.pipeline_mode<synchronous>, transform_indices = @transform_10, window_bounds = array<i64: 1, 32>}, {transform_indices = @transform_11, window_bounds = array<i64: 1, 8, 32>}]} {
    %c0 = arith.constant 0 : index
    %c0_0 = arith.constant 0 : index
    %0 = vector.load %arg3[%c0, %c0_0] : memref<1x32xf32, #tpu.memory_space<vmem>>, vector<1x32xf32>
    %c0_1 = arith.constant 0 : index
    %c0_2 = arith.constant 0 : index
    %1 = vector.load %arg4[%c0_1, %c0_2] : memref<1x32xf32, #tpu.memory_space<vmem>>, vector<1x32xf32>
    %c0_3 = arith.constant 0 : index
    %c0_4 = arith.constant 0 : index
    %c0_5 = arith.constant 0 : index
    %2 = vector.load %arg2[%c0_3, %c0_4, %c0_5] : memref<1x8x32xf32, #tpu.memory_space<vmem>>, vector<1x8x32xf32>
    %3 = vector.shape_cast %2 : vector<1x8x32xf32> to vector<8x32xf32>
    %cst = arith.constant dense<0.000000e+00> : vector<8xf32>
    %4 = vector.multi_reduction <add>, %3, %cst [1] : vector<8x32xf32> to vector<8xf32>
    %5 = vector.shape_cast %4 : vector<8xf32> to vector<8x1xf32>
    %cst_6 = arith.constant 3.200000e+01 : f32
    %6 = vector.broadcast %cst_6 : f32 to vector<8x1xf32>
    %7 = arith.divf %5, %6 : vector<8x1xf32>
    %8 = vector.broadcast %7 : vector<8x1xf32> to vector<8x32xf32>
    %9 = arith.subf %3, %8 : vector<8x32xf32>
    %10 = arith.mulf %9, %9 : vector<8x32xf32>
    %cst_7 = arith.constant dense<0.000000e+00> : vector<8xf32>
    %11 = vector.multi_reduction <add>, %10, %cst_7 [1] : vector<8x32xf32> to vector<8xf32>
    %12 = vector.shape_cast %11 : vector<8xf32> to vector<8x1xf32>
    %cst_8 = arith.constant 3.200000e+01 : f32
    %13 = vector.broadcast %cst_8 : f32 to vector<8x1xf32>
    %14 = arith.divf %12, %13 : vector<8x1xf32>
    %cst_9 = arith.constant 9.99999974E-6 : f32
    %15 = vector.broadcast %cst_9 : f32 to vector<8x1xf32>
    %16 = arith.addf %14, %15 : vector<8x1xf32>
    %17 = math.rsqrt %16 : vector<8x1xf32>
    %18 = vector.broadcast %17 : vector<8x1xf32> to vector<8x32xf32>
    %19 = arith.mulf %9, %18 : vector<8x32xf32>
    %20 = vector.broadcast %0 : vector<1x32xf32> to vector<8x32xf32>
    %21 = arith.mulf %19, %20 : vector<8x32xf32>
    %22 = vector.broadcast %1 : vector<1x32xf32> to vector<8x32xf32>
    %23 = arith.addf %21, %22 : vector<8x32xf32>
    %24 = arith.truncf %23 : vector<8x32xf32> to vector<8x32xbf16>
    %cst_10 = arith.constant 0.000000e+00 : f32
    %25 = vector.broadcast %cst_10 : f32 to vector<8x32xf32>
    %c0_11 = arith.constant 0 : index
    %c0_12 = arith.constant 0 : index
    %c0_13 = arith.constant 0 : index
    %26 = vector.load %arg5[%c0_11, %c0_12, %c0_13] : memref<4x32x8xbf16, #tpu.memory_space<vmem>>, vector<1x32x8xbf16>
    %27 = vector.shape_cast %26 : vector<1x32x8xbf16> to vector<32x8xbf16>
    %cst_14 = arith.constant dense<0.000000e+00> : vector<8x8xf32>
    %28 = tpu.matmul %24, %27, %cst_14 {dimension_numbers = #tpu.dot_dimension_numbers<[1], [0], [0], [1], [0, 0, 1, 1], [], []>} : vector<8x32xbf16>, vector<32x8xbf16>, vector<8x8xf32> -> vector<8x8xf32>
    %c0_15 = arith.constant 0 : index
    %c0_16 = arith.constant 0 : index
    %c0_17 = arith.constant 0 : index
    %29 = vector.load %arg6[%c0_15, %c0_16, %c0_17] : memref<4x1x8xf32, #tpu.memory_space<vmem>>, vector<1x1x8xf32>
    %30 = vector.shape_cast %29 : vector<1x1x8xf32> to vector<1x8xf32>
    %31 = vector.broadcast %30 : vector<1x8xf32> to vector<8x8xf32>
    %32 = arith.addf %28, %31 : vector<8x8xf32>
    %c0_18 = arith.constant 0 : index
    %c0_19 = arith.constant 0 : index
    %c0_20 = arith.constant 0 : index
    %33 = vector.load %arg7[%c0_18, %c0_19, %c0_20] : memref<4x32x8xbf16, #tpu.memory_space<vmem>>, vector<1x32x8xbf16>
    %34 = vector.shape_cast %33 : vector<1x32x8xbf16> to vector<32x8xbf16>
    %cst_21 = arith.constant dense<0.000000e+00> : vector<8x8xf32>
    %35 = tpu.matmul %24, %34, %cst_21 {dimension_numbers = #tpu.dot_dimension_numbers<[1], [0], [0], [1], [0, 0, 1, 1], [], []>} : vector<8x32xbf16>, vector<32x8xbf16>, vector<8x8xf32> -> vector<8x8xf32>
    %c0_22 = arith.constant 0 : index
    %c0_23 = arith.constant 0 : index
    %c0_24 = arith.constant 0 : index
    %36 = vector.load %arg8[%c0_22, %c0_23, %c0_24] : memref<4x1x8xf32, #tpu.memory_space<vmem>>, vector<1x1x8xf32>
    %37 = vector.shape_cast %36 : vector<1x1x8xf32> to vector<1x8xf32>
    %38 = vector.broadcast %37 : vector<1x8xf32> to vector<8x8xf32>
    %39 = arith.addf %35, %38 : vector<8x8xf32>
    %c0_25 = arith.constant 0 : index
    %c0_26 = arith.constant 0 : index
    %c0_27 = arith.constant 0 : index
    %40 = vector.load %arg9[%c0_25, %c0_26, %c0_27] : memref<4x32x8xbf16, #tpu.memory_space<vmem>>, vector<1x32x8xbf16>
    %41 = vector.shape_cast %40 : vector<1x32x8xbf16> to vector<32x8xbf16>
    %cst_28 = arith.constant dense<0.000000e+00> : vector<8x8xf32>
    %42 = tpu.matmul %24, %41, %cst_28 {dimension_numbers = #tpu.dot_dimension_numbers<[1], [0], [0], [1], [0, 0, 1, 1], [], []>} : vector<8x32xbf16>, vector<32x8xbf16>, vector<8x8xf32> -> vector<8x8xf32>
    %c0_29 = arith.constant 0 : index
    %c0_30 = arith.constant 0 : index
    %c0_31 = arith.constant 0 : index
    %43 = vector.load %arg10[%c0_29, %c0_30, %c0_31] : memref<4x1x8xf32, #tpu.memory_space<vmem>>, vector<1x1x8xf32>
    %44 = vector.shape_cast %43 : vector<1x1x8xf32> to vector<1x8xf32>
    %45 = vector.broadcast %44 : vector<1x8xf32> to vector<8x8xf32>
    %46 = arith.addf %42, %45 : vector<8x8xf32>
    %47 = arith.truncf %32 : vector<8x8xf32> to vector<8x8xbf16>
    %48 = arith.truncf %39 : vector<8x8xf32> to vector<8x8xbf16>
    %cst_32 = arith.constant dense<0.000000e+00> : vector<8x8xf32>
    %49 = tpu.matmul %47, %48, %cst_32 {dimension_numbers = #tpu.dot_dimension_numbers<[1], [1], [0], [0], [0, 0, 1, 0], [], []>} : vector<8x8xbf16>, vector<8x8xbf16>, vector<8x8xf32> -> vector<8x8xf32>
    %cst_33 = arith.constant dense<0xFF800000> : vector<8xf32>
    %50 = vector.multi_reduction <maximumf>, %49, %cst_33 [1] : vector<8x8xf32> to vector<8xf32>
    %51 = vector.shape_cast %50 : vector<8xf32> to vector<8x1xf32>
    %52 = vector.broadcast %51 : vector<8x1xf32> to vector<8x8xf32>
    %53 = arith.subf %49, %52 : vector<8x8xf32>
    %54 = math.exp %53 : vector<8x8xf32>
    %cst_34 = arith.constant dense<0.000000e+00> : vector<8xf32>
    %55 = vector.multi_reduction <add>, %54, %cst_34 [1] : vector<8x8xf32> to vector<8xf32>
    %56 = vector.shape_cast %55 : vector<8xf32> to vector<8x1xf32>
    %57 = tpu.reciprocal %56 {approx = true} : vector<8x1xf32> -> vector<8x1xf32>
    %58 = vector.broadcast %57 : vector<8x1xf32> to vector<8x8xf32>
    %59 = arith.mulf %54, %58 : vector<8x8xf32>
    %60 = arith.truncf %59 : vector<8x8xf32> to vector<8x8xbf16>
    %61 = arith.truncf %46 : vector<8x8xf32> to vector<8x8xbf16>
    %cst_35 = arith.constant dense<0.000000e+00> : vector<8x8xf32>
    %62 = tpu.matmul %60, %61, %cst_35 {dimension_numbers = #tpu.dot_dimension_numbers<[1], [0], [0], [1], [0, 0, 1, 1], [], []>} : vector<8x8xbf16>, vector<8x8xbf16>, vector<8x8xf32> -> vector<8x8xf32>
    %63 = arith.truncf %62 : vector<8x8xf32> to vector<8x8xbf16>
    %c0_36 = arith.constant 0 : index
    %c0_37 = arith.constant 0 : index
    %c0_38 = arith.constant 0 : index
    %64 = vector.load %arg11[%c0_36, %c0_37, %c0_38] : memref<4x8x32xbf16, #tpu.memory_space<vmem>>, vector<1x8x32xbf16>
    %65 = vector.shape_cast %64 : vector<1x8x32xbf16> to vector<8x32xbf16>
    %cst_39 = arith.constant dense<0.000000e+00> : vector<8x32xf32>
    %66 = tpu.matmul %63, %65, %cst_39 {dimension_numbers = #tpu.dot_dimension_numbers<[1], [0], [0], [1], [0, 0, 1, 1], [], []>} : vector<8x8xbf16>, vector<8x32xbf16>, vector<8x32xf32> -> vector<8x32xf32>
    %67 = arith.addf %25, %66 : vector<8x32xf32>
    %c1 = arith.constant 1 : index
    %c0_40 = arith.constant 0 : index
    %c0_41 = arith.constant 0 : index
    %68 = vector.load %arg5[%c1, %c0_40, %c0_41] : memref<4x32x8xbf16, #tpu.memory_space<vmem>>, vector<1x32x8xbf16>
    %69 = vector.shape_cast %68 : vector<1x32x8xbf16> to vector<32x8xbf16>
    %cst_42 = arith.constant dense<0.000000e+00> : vector<8x8xf32>
    %70 = tpu.matmul %24, %69, %cst_42 {dimension_numbers = #tpu.dot_dimension_numbers<[1], [0], [0], [1], [0, 0, 1, 1], [], []>} : vector<8x32xbf16>, vector<32x8xbf16>, vector<8x8xf32> -> vector<8x8xf32>
    %c1_43 = arith.constant 1 : index
    %c0_44 = arith.constant 0 : index
    %c0_45 = arith.constant 0 : index
    %71 = vector.load %arg6[%c1_43, %c0_44, %c0_45] : memref<4x1x8xf32, #tpu.memory_space<vmem>>, vector<1x1x8xf32>
    %72 = vector.shape_cast %71 : vector<1x1x8xf32> to vector<1x8xf32>
    %73 = vector.broadcast %72 : vector<1x8xf32> to vector<8x8xf32>
    %74 = arith.addf %70, %73 : vector<8x8xf32>
    %c1_46 = arith.constant 1 : index
    %c0_47 = arith.constant 0 : index
    %c0_48 = arith.constant 0 : index
    %75 = vector.load %arg7[%c1_46, %c0_47, %c0_48] : memref<4x32x8xbf16, #tpu.memory_space<vmem>>, vector<1x32x8xbf16>
    %76 = vector.shape_cast %75 : vector<1x32x8xbf16> to vector<32x8xbf16>
    %cst_49 = arith.constant dense<0.000000e+00> : vector<8x8xf32>
    %77 = tpu.matmul %24, %76, %cst_49 {dimension_numbers = #tpu.dot_dimension_numbers<[1], [0], [0], [1], [0, 0, 1, 1], [], []>} : vector<8x32xbf16>, vector<32x8xbf16>, vector<8x8xf32> -> vector<8x8xf32>
    %c1_50 = arith.constant 1 : index
    %c0_51 = arith.constant 0 : index
    %c0_52 = arith.constant 0 : index
    %78 = vector.load %arg8[%c1_50, %c0_51, %c0_52] : memref<4x1x8xf32, #tpu.memory_space<vmem>>, vector<1x1x8xf32>
    %79 = vector.shape_cast %78 : vector<1x1x8xf32> to vector<1x8xf32>
    %80 = vector.broadcast %79 : vector<1x8xf32> to vector<8x8xf32>
    %81 = arith.addf %77, %80 : vector<8x8xf32>
    %c1_53 = arith.constant 1 : index
    %c0_54 = arith.constant 0 : index
    %c0_55 = arith.constant 0 : index
    %82 = vector.load %arg9[%c1_53, %c0_54, %c0_55] : memref<4x32x8xbf16, #tpu.memory_space<vmem>>, vector<1x32x8xbf16>
    %83 = vector.shape_cast %82 : vector<1x32x8xbf16> to vector<32x8xbf16>
    %cst_56 = arith.constant dense<0.000000e+00> : vector<8x8xf32>
    %84 = tpu.matmul %24, %83, %cst_56 {dimension_numbers = #tpu.dot_dimension_numbers<[1], [0], [0], [1], [0, 0, 1, 1], [], []>} : vector<8x32xbf16>, vector<32x8xbf16>, vector<8x8xf32> -> vector<8x8xf32>
    %c1_57 = arith.constant 1 : index
    %c0_58 = arith.constant 0 : index
    %c0_59 = arith.constant 0 : index
    %85 = vector.load %arg10[%c1_57, %c0_58, %c0_59] : memref<4x1x8xf32, #tpu.memory_space<vmem>>, vector<1x1x8xf32>
    %86 = vector.shape_cast %85 : vector<1x1x8xf32> to vector<1x8xf32>
    %87 = vector.broadcast %86 : vector<1x8xf32> to vector<8x8xf32>
    %88 = arith.addf %84, %87 : vector<8x8xf32>
    %89 = arith.truncf %74 : vector<8x8xf32> to vector<8x8xbf16>
    %90 = arith.truncf %81 : vector<8x8xf32> to vector<8x8xbf16>
    %cst_60 = arith.constant dense<0.000000e+00> : vector<8x8xf32>
    %91 = tpu.matmul %89, %90, %cst_60 {dimension_numbers = #tpu.dot_dimension_numbers<[1], [1], [0], [0], [0, 0, 1, 0], [], []>} : vector<8x8xbf16>, vector<8x8xbf16>, vector<8x8xf32> -> vector<8x8xf32>
    %cst_61 = arith.constant dense<0xFF800000> : vector<8xf32>
    %92 = vector.multi_reduction <maximumf>, %91, %cst_61 [1] : vector<8x8xf32> to vector<8xf32>
    %93 = vector.shape_cast %92 : vector<8xf32> to vector<8x1xf32>
    %94 = vector.broadcast %93 : vector<8x1xf32> to vector<8x8xf32>
    %95 = arith.subf %91, %94 : vector<8x8xf32>
    %96 = math.exp %95 : vector<8x8xf32>
    %cst_62 = arith.constant dense<0.000000e+00> : vector<8xf32>
    %97 = vector.multi_reduction <add>, %96, %cst_62 [1] : vector<8x8xf32> to vector<8xf32>
    %98 = vector.shape_cast %97 : vector<8xf32> to vector<8x1xf32>
    %99 = tpu.reciprocal %98 {approx = true} : vector<8x1xf32> -> vector<8x1xf32>
    %100 = vector.broadcast %99 : vector<8x1xf32> to vector<8x8xf32>
    %101 = arith.mulf %96, %100 : vector<8x8xf32>
    %102 = arith.truncf %101 : vector<8x8xf32> to vector<8x8xbf16>
    %103 = arith.truncf %88 : vector<8x8xf32> to vector<8x8xbf16>
    %cst_63 = arith.constant dense<0.000000e+00> : vector<8x8xf32>
    %104 = tpu.matmul %102, %103, %cst_63 {dimension_numbers = #tpu.dot_dimension_numbers<[1], [0], [0], [1], [0, 0, 1, 1], [], []>} : vector<8x8xbf16>, vector<8x8xbf16>, vector<8x8xf32> -> vector<8x8xf32>
    %105 = arith.truncf %104 : vector<8x8xf32> to vector<8x8xbf16>
    %c1_64 = arith.constant 1 : index
    %c0_65 = arith.constant 0 : index
    %c0_66 = arith.constant 0 : index
    %106 = vector.load %arg11[%c1_64, %c0_65, %c0_66] : memref<4x8x32xbf16, #tpu.memory_space<vmem>>, vector<1x8x32xbf16>
    %107 = vector.shape_cast %106 : vector<1x8x32xbf16> to vector<8x32xbf16>
    %cst_67 = arith.constant dense<0.000000e+00> : vector<8x32xf32>
    %108 = tpu.matmul %105, %107, %cst_67 {dimension_numbers = #tpu.dot_dimension_numbers<[1], [0], [0], [1], [0, 0, 1, 1], [], []>} : vector<8x8xbf16>, vector<8x32xbf16>, vector<8x32xf32> -> vector<8x32xf32>
    %109 = arith.addf %67, %108 : vector<8x32xf32>
    %c2 = arith.constant 2 : index
    %c0_68 = arith.constant 0 : index
    %c0_69 = arith.constant 0 : index
    %110 = vector.load %arg5[%c2, %c0_68, %c0_69] : memref<4x32x8xbf16, #tpu.memory_space<vmem>>, vector<1x32x8xbf16>
    %111 = vector.shape_cast %110 : vector<1x32x8xbf16> to vector<32x8xbf16>
    %cst_70 = arith.constant dense<0.000000e+00> : vector<8x8xf32>
    %112 = tpu.matmul %24, %111, %cst_70 {dimension_numbers = #tpu.dot_dimension_numbers<[1], [0], [0], [1], [0, 0, 1, 1], [], []>} : vector<8x32xbf16>, vector<32x8xbf16>, vector<8x8xf32> -> vector<8x8xf32>
    %c2_71 = arith.constant 2 : index
    %c0_72 = arith.constant 0 : index
    %c0_73 = arith.constant 0 : index
    %113 = vector.load %arg6[%c2_71, %c0_72, %c0_73] : memref<4x1x8xf32, #tpu.memory_space<vmem>>, vector<1x1x8xf32>
    %114 = vector.shape_cast %113 : vector<1x1x8xf32> to vector<1x8xf32>
    %115 = vector.broadcast %114 : vector<1x8xf32> to vector<8x8xf32>
    %116 = arith.addf %112, %115 : vector<8x8xf32>
    %c2_74 = arith.constant 2 : index
    %c0_75 = arith.constant 0 : index
    %c0_76 = arith.constant 0 : index
    %117 = vector.load %arg7[%c2_74, %c0_75, %c0_76] : memref<4x32x8xbf16, #tpu.memory_space<vmem>>, vector<1x32x8xbf16>
    %118 = vector.shape_cast %117 : vector<1x32x8xbf16> to vector<32x8xbf16>
    %cst_77 = arith.constant dense<0.000000e+00> : vector<8x8xf32>
    %119 = tpu.matmul %24, %118, %cst_77 {dimension_numbers = #tpu.dot_dimension_numbers<[1], [0], [0], [1], [0, 0, 1, 1], [], []>} : vector<8x32xbf16>, vector<32x8xbf16>, vector<8x8xf32> -> vector<8x8xf32>
    %c2_78 = arith.constant 2 : index
    %c0_79 = arith.constant 0 : index
    %c0_80 = arith.constant 0 : index
    %120 = vector.load %arg8[%c2_78, %c0_79, %c0_80] : memref<4x1x8xf32, #tpu.memory_space<vmem>>, vector<1x1x8xf32>
    %121 = vector.shape_cast %120 : vector<1x1x8xf32> to vector<1x8xf32>
    %122 = vector.broadcast %121 : vector<1x8xf32> to vector<8x8xf32>
    %123 = arith.addf %119, %122 : vector<8x8xf32>
    %c2_81 = arith.constant 2 : index
    %c0_82 = arith.constant 0 : index
    %c0_83 = arith.constant 0 : index
    %124 = vector.load %arg9[%c2_81, %c0_82, %c0_83] : memref<4x32x8xbf16, #tpu.memory_space<vmem>>, vector<1x32x8xbf16>
    %125 = vector.shape_cast %124 : vector<1x32x8xbf16> to vector<32x8xbf16>
    %cst_84 = arith.constant dense<0.000000e+00> : vector<8x8xf32>
    %126 = tpu.matmul %24, %125, %cst_84 {dimension_numbers = #tpu.dot_dimension_numbers<[1], [0], [0], [1], [0, 0, 1, 1], [], []>} : vector<8x32xbf16>, vector<32x8xbf16>, vector<8x8xf32> -> vector<8x8xf32>
    %c2_85 = arith.constant 2 : index
    %c0_86 = arith.constant 0 : index
    %c0_87 = arith.constant 0 : index
    %127 = vector.load %arg10[%c2_85, %c0_86, %c0_87] : memref<4x1x8xf32, #tpu.memory_space<vmem>>, vector<1x1x8xf32>
    %128 = vector.shape_cast %127 : vector<1x1x8xf32> to vector<1x8xf32>
    %129 = vector.broadcast %128 : vector<1x8xf32> to vector<8x8xf32>
    %130 = arith.addf %126, %129 : vector<8x8xf32>
    %131 = arith.truncf %116 : vector<8x8xf32> to vector<8x8xbf16>
    %132 = arith.truncf %123 : vector<8x8xf32> to vector<8x8xbf16>
    %cst_88 = arith.constant dense<0.000000e+00> : vector<8x8xf32>
    %133 = tpu.matmul %131, %132, %cst_88 {dimension_numbers = #tpu.dot_dimension_numbers<[1], [1], [0], [0], [0, 0, 1, 0], [], []>} : vector<8x8xbf16>, vector<8x8xbf16>, vector<8x8xf32> -> vector<8x8xf32>
    %cst_89 = arith.constant dense<0xFF800000> : vector<8xf32>
    %134 = vector.multi_reduction <maximumf>, %133, %cst_89 [1] : vector<8x8xf32> to vector<8xf32>
    %135 = vector.shape_cast %134 : vector<8xf32> to vector<8x1xf32>
    %136 = vector.broadcast %135 : vector<8x1xf32> to vector<8x8xf32>
    %137 = arith.subf %133, %136 : vector<8x8xf32>
    %138 = math.exp %137 : vector<8x8xf32>
    %cst_90 = arith.constant dense<0.000000e+00> : vector<8xf32>
    %139 = vector.multi_reduction <add>, %138, %cst_90 [1] : vector<8x8xf32> to vector<8xf32>
    %140 = vector.shape_cast %139 : vector<8xf32> to vector<8x1xf32>
    %141 = tpu.reciprocal %140 {approx = true} : vector<8x1xf32> -> vector<8x1xf32>
    %142 = vector.broadcast %141 : vector<8x1xf32> to vector<8x8xf32>
    %143 = arith.mulf %138, %142 : vector<8x8xf32>
    %144 = arith.truncf %143 : vector<8x8xf32> to vector<8x8xbf16>
    %145 = arith.truncf %130 : vector<8x8xf32> to vector<8x8xbf16>
    %cst_91 = arith.constant dense<0.000000e+00> : vector<8x8xf32>
    %146 = tpu.matmul %144, %145, %cst_91 {dimension_numbers = #tpu.dot_dimension_numbers<[1], [0], [0], [1], [0, 0, 1, 1], [], []>} : vector<8x8xbf16>, vector<8x8xbf16>, vector<8x8xf32> -> vector<8x8xf32>
    %147 = arith.truncf %146 : vector<8x8xf32> to vector<8x8xbf16>
    %c2_92 = arith.constant 2 : index
    %c0_93 = arith.constant 0 : index
    %c0_94 = arith.constant 0 : index
    %148 = vector.load %arg11[%c2_92, %c0_93, %c0_94] : memref<4x8x32xbf16, #tpu.memory_space<vmem>>, vector<1x8x32xbf16>
    %149 = vector.shape_cast %148 : vector<1x8x32xbf16> to vector<8x32xbf16>
    %cst_95 = arith.constant dense<0.000000e+00> : vector<8x32xf32>
    %150 = tpu.matmul %147, %149, %cst_95 {dimension_numbers = #tpu.dot_dimension_numbers<[1], [0], [0], [1], [0, 0, 1, 1], [], []>} : vector<8x8xbf16>, vector<8x32xbf16>, vector<8x32xf32> -> vector<8x32xf32>
    %151 = arith.addf %109, %150 : vector<8x32xf32>
    %c3 = arith.constant 3 : index
    %c0_96 = arith.constant 0 : index
    %c0_97 = arith.constant 0 : index
    %152 = vector.load %arg5[%c3, %c0_96, %c0_97] : memref<4x32x8xbf16, #tpu.memory_space<vmem>>, vector<1x32x8xbf16>
    %153 = vector.shape_cast %152 : vector<1x32x8xbf16> to vector<32x8xbf16>
    %cst_98 = arith.constant dense<0.000000e+00> : vector<8x8xf32>
    %154 = tpu.matmul %24, %153, %cst_98 {dimension_numbers = #tpu.dot_dimension_numbers<[1], [0], [0], [1], [0, 0, 1, 1], [], []>} : vector<8x32xbf16>, vector<32x8xbf16>, vector<8x8xf32> -> vector<8x8xf32>
    %c3_99 = arith.constant 3 : index
    %c0_100 = arith.constant 0 : index
    %c0_101 = arith.constant 0 : index
    %155 = vector.load %arg6[%c3_99, %c0_100, %c0_101] : memref<4x1x8xf32, #tpu.memory_space<vmem>>, vector<1x1x8xf32>
    %156 = vector.shape_cast %155 : vector<1x1x8xf32> to vector<1x8xf32>
    %157 = vector.broadcast %156 : vector<1x8xf32> to vector<8x8xf32>
    %158 = arith.addf %154, %157 : vector<8x8xf32>
    %c3_102 = arith.constant 3 : index
    %c0_103 = arith.constant 0 : index
    %c0_104 = arith.constant 0 : index
    %159 = vector.load %arg7[%c3_102, %c0_103, %c0_104] : memref<4x32x8xbf16, #tpu.memory_space<vmem>>, vector<1x32x8xbf16>
    %160 = vector.shape_cast %159 : vector<1x32x8xbf16> to vector<32x8xbf16>
    %cst_105 = arith.constant dense<0.000000e+00> : vector<8x8xf32>
    %161 = tpu.matmul %24, %160, %cst_105 {dimension_numbers = #tpu.dot_dimension_numbers<[1], [0], [0], [1], [0, 0, 1, 1], [], []>} : vector<8x32xbf16>, vector<32x8xbf16>, vector<8x8xf32> -> vector<8x8xf32>
    %c3_106 = arith.constant 3 : index
    %c0_107 = arith.constant 0 : index
    %c0_108 = arith.constant 0 : index
    %162 = vector.load %arg8[%c3_106, %c0_107, %c0_108] : memref<4x1x8xf32, #tpu.memory_space<vmem>>, vector<1x1x8xf32>
    %163 = vector.shape_cast %162 : vector<1x1x8xf32> to vector<1x8xf32>
    %164 = vector.broadcast %163 : vector<1x8xf32> to vector<8x8xf32>
    %165 = arith.addf %161, %164 : vector<8x8xf32>
    %c3_109 = arith.constant 3 : index
    %c0_110 = arith.constant 0 : index
    %c0_111 = arith.constant 0 : index
    %166 = vector.load %arg9[%c3_109, %c0_110, %c0_111] : memref<4x32x8xbf16, #tpu.memory_space<vmem>>, vector<1x32x8xbf16>
    %167 = vector.shape_cast %166 : vector<1x32x8xbf16> to vector<32x8xbf16>
    %cst_112 = arith.constant dense<0.000000e+00> : vector<8x8xf32>
    %168 = tpu.matmul %24, %167, %cst_112 {dimension_numbers = #tpu.dot_dimension_numbers<[1], [0], [0], [1], [0, 0, 1, 1], [], []>} : vector<8x32xbf16>, vector<32x8xbf16>, vector<8x8xf32> -> vector<8x8xf32>
    %c3_113 = arith.constant 3 : index
    %c0_114 = arith.constant 0 : index
    %c0_115 = arith.constant 0 : index
    %169 = vector.load %arg10[%c3_113, %c0_114, %c0_115] : memref<4x1x8xf32, #tpu.memory_space<vmem>>, vector<1x1x8xf32>
    %170 = vector.shape_cast %169 : vector<1x1x8xf32> to vector<1x8xf32>
    %171 = vector.broadcast %170 : vector<1x8xf32> to vector<8x8xf32>
    %172 = arith.addf %168, %171 : vector<8x8xf32>
    %173 = arith.truncf %158 : vector<8x8xf32> to vector<8x8xbf16>
    %174 = arith.truncf %165 : vector<8x8xf32> to vector<8x8xbf16>
    %cst_116 = arith.constant dense<0.000000e+00> : vector<8x8xf32>
    %175 = tpu.matmul %173, %174, %cst_116 {dimension_numbers = #tpu.dot_dimension_numbers<[1], [1], [0], [0], [0, 0, 1, 0], [], []>} : vector<8x8xbf16>, vector<8x8xbf16>, vector<8x8xf32> -> vector<8x8xf32>
    %cst_117 = arith.constant dense<0xFF800000> : vector<8xf32>
    %176 = vector.multi_reduction <maximumf>, %175, %cst_117 [1] : vector<8x8xf32> to vector<8xf32>
    %177 = vector.shape_cast %176 : vector<8xf32> to vector<8x1xf32>
    %178 = vector.broadcast %177 : vector<8x1xf32> to vector<8x8xf32>
    %179 = arith.subf %175, %178 : vector<8x8xf32>
    %180 = math.exp %179 : vector<8x8xf32>
    %cst_118 = arith.constant dense<0.000000e+00> : vector<8xf32>
    %181 = vector.multi_reduction <add>, %180, %cst_118 [1] : vector<8x8xf32> to vector<8xf32>
    %182 = vector.shape_cast %181 : vector<8xf32> to vector<8x1xf32>
    %183 = tpu.reciprocal %182 {approx = true} : vector<8x1xf32> -> vector<8x1xf32>
    %184 = vector.broadcast %183 : vector<8x1xf32> to vector<8x8xf32>
    %185 = arith.mulf %180, %184 : vector<8x8xf32>
    %186 = arith.truncf %185 : vector<8x8xf32> to vector<8x8xbf16>
    %187 = arith.truncf %172 : vector<8x8xf32> to vector<8x8xbf16>
    %cst_119 = arith.constant dense<0.000000e+00> : vector<8x8xf32>
    %188 = tpu.matmul %186, %187, %cst_119 {dimension_numbers = #tpu.dot_dimension_numbers<[1], [0], [0], [1], [0, 0, 1, 1], [], []>} : vector<8x8xbf16>, vector<8x8xbf16>, vector<8x8xf32> -> vector<8x8xf32>
    %189 = arith.truncf %188 : vector<8x8xf32> to vector<8x8xbf16>
    %c3_120 = arith.constant 3 : index
    %c0_121 = arith.constant 0 : index
    %c0_122 = arith.constant 0 : index
    %190 = vector.load %arg11[%c3_120, %c0_121, %c0_122] : memref<4x8x32xbf16, #tpu.memory_space<vmem>>, vector<1x8x32xbf16>
    %191 = vector.shape_cast %190 : vector<1x8x32xbf16> to vector<8x32xbf16>
    %cst_123 = arith.constant dense<0.000000e+00> : vector<8x32xf32>
    %192 = tpu.matmul %189, %191, %cst_123 {dimension_numbers = #tpu.dot_dimension_numbers<[1], [0], [0], [1], [0, 0, 1, 1], [], []>} : vector<8x8xbf16>, vector<8x32xbf16>, vector<8x32xf32> -> vector<8x32xf32>
    %193 = arith.addf %151, %192 : vector<8x32xf32>
    %c0_124 = arith.constant 0 : index
    %c0_125 = arith.constant 0 : index
    %194 = vector.load %arg12[%c0_124, %c0_125] : memref<1x32xf32, #tpu.memory_space<vmem>>, vector<1x32xf32>
    %195 = vector.broadcast %194 : vector<1x32xf32> to vector<8x32xf32>
    %196 = arith.addf %193, %195 : vector<8x32xf32>
    %c0_126 = arith.constant 0 : index
    %c0_127 = arith.constant 0 : index
    %c0_128 = arith.constant 0 : index
    %197 = vector.load %arg13[%c0_126, %c0_127, %c0_128] : memref<1x8x32xf32, #tpu.memory_space<vmem>>, vector<1x8x32xf32>
    %198 = vector.shape_cast %197 : vector<1x8x32xf32> to vector<8x32xf32>
    %199 = vector.shape_cast %196 : vector<8x32xf32> to vector<1x8x32xf32>
    tpu.vector_store %arg13[%c0_126, %c0_127, %c0_128], %199 {strides = array<i32>} : memref<1x8x32xf32, #tpu.memory_space<vmem>>, vector<1x8x32xf32>,
    return
  }
  func.func @transform_0(%arg0: i32, %arg1: i32) -> (i32, i32, i32) {
    %c0_i32 = arith.constant 0 : i32
    %c0_i32_0 = arith.constant 0 : i32
    %c0_i32_1 = arith.constant 0 : i32
    return %arg0, %c0_i32, %c0_i32_0 : i32, i32, i32
  }
  func.func @transform_1(%arg0: i32, %arg1: i32) -> (i32, i32) {
    %c0_i32 = arith.constant 0 : i32
    %c0_i32_0 = arith.constant 0 : i32
    %c0_i32_1 = arith.constant 0 : i32
    return %c0_i32, %c0_i32_0 : i32, i32
  }
  func.func @transform_2(%arg0: i32, %arg1: i32) -> (i32, i32) {
    %c0_i32 = arith.constant 0 : i32
    %c0_i32_0 = arith.constant 0 : i32
    %c0_i32_1 = arith.constant 0 : i32
    return %c0_i32, %c0_i32_0 : i32, i32
  }
  func.func @transform_3(%arg0: i32, %arg1: i32) -> (i32, i32, i32) {
    %c0_i32 = arith.constant 0 : i32
    %c0_i32_0 = arith.constant 0 : i32
    %c0_i32_1 = arith.constant 0 : i32
    %c0_i32_2 = arith.constant 0 : i32
    return %c0_i32, %c0_i32_0, %c0_i32_1 : i32, i32, i32
  }
  func.func @transform_4(%arg0: i32, %arg1: i32) -> (i32, i32, i32) {
    %c0_i32 = arith.constant 0 : i32
    %c0_i32_0 = arith.constant 0 : i32
    %c0_i32_1 = arith.constant 0 : i32
    %c0_i32_2 = arith.constant 0 : i32
    return %c0_i32, %c0_i32_0, %c0_i32_1 : i32, i32, i32
  }
  func.func @transform_5(%arg0: i32, %arg1: i32) -> (i32, i32, i32) {
    %c0_i32 = arith.constant 0 : i32
    %c0_i32_0 = arith.constant 0 : i32
    %c0_i32_1 = arith.constant 0 : i32
    %c0_i32_2 = arith.constant 0 : i32
    return %c0_i32, %c0_i32_0, %c0_i32_1 : i32, i32, i32
  }
  func.func @transform_6(%arg0: i32, %arg1: i32) -> (i32, i32, i32) {
    %c0_i32 = arith.constant 0 : i32
    %c0_i32_0 = arith.constant 0 : i32
    %c0_i32_1 = arith.constant 0 : i32
    %c0_i32_2 = arith.constant 0 : i32
    return %c0_i32, %c0_i32_0, %c0_i32_1 : i32, i32, i32
  }
  func.func @transform_7(%arg0: i32, %arg1: i32) -> (i32, i32, i32) {
    %c0_i32 = arith.constant 0 : i32
    %c0_i32_0 = arith.constant 0 : i32
    %c0_i32_1 = arith.constant 0 : i32
    %c0_i32_2 = arith.constant 0 : i32
    return %c0_i32, %c0_i32_0, %c0_i32_1 : i32, i32, i32
  }
  func.func @transform_8(%arg0: i32, %arg1: i32) -> (i32, i32, i32) {
    %c0_i32 = arith.constant 0 : i32
    %c0_i32_0 = arith.constant 0 : i32
    %c0_i32_1 = arith.constant 0 : i32
    %c0_i32_2 = arith.constant 0 : i32
    return %c0_i32, %c0_i32_0, %c0_i32_1 : i32, i32, i32
  }
  func.func @transform_9(%arg0: i32, %arg1: i32) -> (i32, i32, i32) {
    %c0_i32 = arith.constant 0 : i32
    %c0_i32_0 = arith.constant 0 : i32
    %c0_i32_1 = arith.constant 0 : i32
    %c0_i32_2 = arith.constant 0 : i32
    return %c0_i32, %c0_i32_0, %c0_i32_1 : i32, i32, i32
  }
  func.func @transform_10(%arg0: i32, %arg1: i32) -> (i32, i32) {
    %c0_i32 = arith.constant 0 : i32
    %c0_i32_0 = arith.constant 0 : i32
    %c0_i32_1 = arith.constant 0 : i32
    return %c0_i32, %c0_i32_0 : i32, i32
  }
  func.func @transform_11(%arg0: i32, %arg1: i32) -> (i32, i32, i32) {
    %c0_i32 = arith.constant 0 : i32
    %c0_i32_0 = arith.constant 0 : i32
    return %arg0, %arg1, %c0_i32 : i32, i32, i32
  }
}

</mosaic_0001>

<llo_original>
// kernel: tpu_custom_call.1
$region0: #{tpu_custom_call.1}
  #allocation0 [shape = 'u32[]', space=smem, size = 0x4, offset = 0x4, fixed_abs, tag = 'smem constant byte address 0x4 - core index']
  #allocation1 [shape = 'u32[144,128]{1,0:T(1,128)}', space=vmem, size = 0x12000, scoped, tag = 'internal scratch']
  %s0 = inlined_call_operand.vmem [shape: f32[2,8,32], index: 0, kind: input, shape index: {}]
  %s1 = inlined_call_operand.vmem [shape: f32[1,32], index: 1, kind: input, shape index: {}]
  %s2 = inlined_call_operand.vmem [shape: f32[1,32], index: 2, kind: input, shape index: {}]
  %s3 = inlined_call_operand.vmem [shape: bf16[4,32,8], index: 3, kind: input, shape index: {}]
  %s4 = inlined_call_operand.vmem [shape: f32[4,1,8], index: 4, kind: input, shape index: {}]
  %s5 = inlined_call_operand.vmem [shape: bf16[4,32,8], index: 5, kind: input, shape index: {}]
  %s6 = inlined_call_operand.vmem [shape: f32[4,1,8], index: 6, kind: input, shape index: {}]
  %s7 = inlined_call_operand.vmem [shape: bf16[4,32,8], index: 7, kind: input, shape index: {}]
  %s8 = inlined_call_operand.vmem [shape: f32[4,1,8], index: 8, kind: input, shape index: {}]
  %s9 = inlined_call_operand.vmem [shape: bf16[4,8,32], index: 9, kind: input, shape index: {}]
  %s10 = inlined_call_operand.vmem [shape: f32[1,32], index: 10, kind: input, shape index: {}]
  %s11 = inlined_call_operand.hbm [shape: f32[2,8,32], index: 11, kind: output, shape index: {}]
  %s12 = sld [smem:[#allocation0]]
  $region77: #{tpu_custom_call.1} parent=0
    _
  %s14 = ssub.s32 1, %s12
  %s15 = scalar_select 0, %s14, %s12
  $region1: #{tpu_custom_call.1} parent=0
    #allocation2 [shape = 'u8[8192]{0}', space=vmem, size = 0x2000, scoped, tag = 'output window, operand 0']
    #allocation3 [shape = 's32[2]{0}', space=sflag, size = 0x8, scoped, tag = 'scoped memory for tpu_custom_call.1']
    %16 = vsyncpa [#allocation3], 0
    %s17 = scalar_lea.sflag [#allocation3], 1
    %18 = vsyncpa %s17, 0
    loop: start=0, step=1, limit=4
    $region2: #{tpu_custom_call.1} parent=1 // loop_pre_header
      _
    $region3: #{tpu_custom_call.1} parent=1 // loop_header
      %s20 = sphi 0, %s24
      %p21 = scmp.ge.s32.totalorder %s20, 4
      %s27 = sphi 0, %s39
      %s28 = sphi 0, %s35
      %s29 = sphi 0, %s27
      %s30 = sphi 0, %s28
      %s31 = sphi 0, %s29
      %s32 = sphi 0, %s30
      %s42 = sphi 0, %s44
      %s45 = sphi 0, %s42
      %s46 = sphi 0, %s45
      %s62 = sphi 0, %s46
      %s66 = sphi 0, %s66
      %s68 = sphi 0, %s66
      %s69 = sphi 0, %s68
      %s83 = sphi 0, %s69
      %s87 = sphi 0, %s87
      %s89 = sphi 0, %s87
      %s90 = sphi 0, %s89
      %s104 = sphi 0, %s90
      %s108 = sphi 0, %s108
      %s110 = sphi 0, %s108
      %s111 = sphi 0, %s110
      %s125 = sphi 0, %s111
      %s129 = sphi 0, %s129
      %s131 = sphi 0, %s129
      %s132 = sphi 0, %s131
      %s146 = sphi 0, %s132
      %s150 = sphi 0, %s150
      %s152 = sphi 0, %s150
      %s153 = sphi 0, %s152
      %s167 = sphi 0, %s153
      %s171 = sphi 0, %s171
      %s173 = sphi 0, %s171
      %s174 = sphi 0, %s173
      %s188 = sphi 0, %s174
      %s192 = sphi 0, %s192
      %s194 = sphi 0, %s192
      %s195 = sphi 0, %s194
      %s209 = sphi 0, %s195
      %s213 = sphi 0, %s213
      %s215 = sphi 0, %s213
      %s216 = sphi 0, %s215
      %s230 = sphi 0, %s216
      %s234 = sphi 0, %s234
      %s236 = sphi 0, %s234
      %s237 = sphi 0, %s236
      %s251 = sphi 0, %s237
      %s255 = sphi 0, %s255
      %s257 = sphi 0, %s255
      %s258 = sphi 0, %s257
      %s272 = sphi 0, %s258
      %s280 = sphi 0, %s282
      %s283 = sphi 0, %s280
      %s284 = sphi 0, %s283
      %s300 = sphi 0, %s284
    $region4: #{tpu_custom_call.1} parent=1 // loop_header_branch
      %23 = sbr.rel (%p21) target = $region8
    $region5: #{tpu_custom_call.1} parent=1 // loop_body
      %s25 = ssub.s32 %s20, 1
      %s26 = ssub.s32 %s20, 2
      %s33 = sadd.s32 1, %s28
      %p34 = scmp.ge.s32.totalorder %s33, 1
      %s35 = scalar_select %p34, 0, %s33
      %s36 = sadd.s32 1, %s27
      %s37 = scalar_select %p34, %s36, %s27
      %p38 = scmp.ge.s32.totalorder %s37, 2
      %s39 = scalar_select %p38, 0, %s37
      %s40 = ssub.s32 %s27, %s39
      %p41 = scmp.eq.s32.totalorder %s40, 0
      %s43 = sadd.s32 %s42, 1
      %s44 = scalar_select %p41, %s42, %s43
      %p47 = pneg %p41
      %p48 = scmp.eq.s32.totalorder %s20, 1
      %p49 = por %p47, %p48
      %p50 = scmp.ne.s32.totalorder %s42, %s45
      %p51 = scmp.eq.s32.totalorder %s20, 0
      %p52 = por %p50, %p51
      %p53 = scmp.ne.s32.totalorder %s42, %s45
      %p54 = scmp.eq.s32.totalorder %s25, 1
      %p55 = por %p53, %p54
      %p56 = scmp.ne.s32.totalorder %s45, %s46
      %p57 = scmp.eq.s32.totalorder %s25, 0
      %p58 = por %p56, %p57
      %p59 = scmp.ne.s32.totalorder %s45, %s46
      %p60 = scmp.eq.s32.totalorder %s26, 1
      %p61 = por %p59, %p60
      %p63 = scmp.ne.s32.totalorder %s46, %s62
      %p64 = scmp.eq.s32.totalorder %s26, 0
      %p65 = por %p63, %p64
      %s67 = sadd.s32 %s66, 1
      %p70 = scmp.eq.s32.totalorder %s20, 1
      %p71 = scmp.ne.s32.totalorder %s66, %s68
      %p72 = scmp.eq.s32.totalorder %s20, 0
      %p73 = por %p71, %p72
      %p74 = scmp.ne.s32.totalorder %s66, %s68
      %p75 = scmp.eq.s32.totalorder %s25, 1
      %p76 = por %p74, %p75
      %p77 = scmp.ne.s32.totalorder %s68, %s69
      %p78 = scmp.eq.s32.totalorder %s25, 0
      %p79 = por %p77, %p78
      %p80 = scmp.ne.s32.totalorder %s68, %s69
      %p81 = scmp.eq.s32.totalorder %s26, 1
      %p82 = por %p80, %p81
      %p84 = scmp.ne.s32.totalorder %s69, %s83
      %p85 = scmp.eq.s32.totalorder %s26, 0
      %p86 = por %p84, %p85
      %s88 = sadd.s32 %s87, 1
      %p91 = scmp.eq.s32.totalorder %s20, 1
      %p92 = scmp.ne.s32.totalorder %s87, %s89
      %p93 = scmp.eq.s32.totalorder %s20, 0
      %p94 = por %p92, %p93
      %p95 = scmp.ne.s32.totalorder %s87, %s89
      %p96 = scmp.eq.s32.totalorder %s25, 1
      %p97 = por %p95, %p96
      %p98 = scmp.ne.s32.totalorder %s89, %s90
      %p99 = scmp.eq.s32.totalorder %s25, 0
      %p100 = por %p98, %p99
      %p101 = scmp.ne.s32.totalorder %s89, %s90
      %p102 = scmp.eq.s32.totalorder %s26, 1
      %p103 = por %p101, %p102
      %p105 = scmp.ne.s32.totalorder %s90, %s104
      %p106 = scmp.eq.s32.totalorder %s26, 0
      %p107 = por %p105, %p106
      %s109 = sadd.s32 %s108, 1
      %p112 = scmp.eq.s32.totalorder %s20, 1
      %p113 = scmp.ne.s32.totalorder %s108, %s110
      %p114 = scmp.eq.s32.totalorder %s20, 0
      %p115 = por %p113, %p114
      %p116 = scmp.ne.s32.totalorder %s108, %s110
      %p117 = scmp.eq.s32.totalorder %s25, 1
      %p118 = por %p116, %p117
      %p119 = scmp.ne.s32.totalorder %s110, %s111
      %p120 = scmp.eq.s32.totalorder %s25, 0
      %p121 = por %p119, %p120
      %p122 = scmp.ne.s32.totalorder %s110, %s111
      %p123 = scmp.eq.s32.totalorder %s26, 1
      %p124 = por %p122, %p123
      %p126 = scmp.ne.s32.totalorder %s111, %s125
      %p127 = scmp.eq.s32.totalorder %s26, 0
      %p128 = por %p126, %p127
      %s130 = sadd.s32 %s129, 1
      %p133 = scmp.eq.s32.totalorder %s20, 1
      %p134 = scmp.ne.s32.totalorder %s129, %s131
      %p135 = scmp.eq.s32.totalorder %s20, 0
      %p136 = por %p134, %p135
      %p137 = scmp.ne.s32.totalorder %s129, %s131
      %p138 = scmp.eq.s32.totalorder %s25, 1
      %p139 = por %p137, %p138
      %p140 = scmp.ne.s32.totalorder %s131, %s132
      %p141 = scmp.eq.s32.totalorder %s25, 0
      %p142 = por %p140, %p141
      %p143 = scmp.ne.s32.totalorder %s131, %s132
      %p144 = scmp.eq.s32.totalorder %s26, 1
      %p145 = por %p143, %p144
      %p147 = scmp.ne.s32.totalorder %s132, %s146
      %p148 = scmp.eq.s32.totalorder %s26, 0
      %p149 = por %p147, %p148
      %s151 = sadd.s32 %s150, 1
      %p154 = scmp.eq.s32.totalorder %s20, 1
      %p155 = scmp.ne.s32.totalorder %s150, %s152
      %p156 = scmp.eq.s32.totalorder %s20, 0
      %p157 = por %p155, %p156
      %p158 = scmp.ne.s32.totalorder %s150, %s152
      %p159 = scmp.eq.s32.totalorder %s25, 1
      %p160 = por %p158, %p159
      %p161 = scmp.ne.s32.totalorder %s152, %s153
      %p162 = scmp.eq.s32.totalorder %s25, 0
      %p163 = por %p161, %p162
      %p164 = scmp.ne.s32.totalorder %s152, %s153
      %p165 = scmp.eq.s32.totalorder %s26, 1
      %p166 = por %p164, %p165
      %p168 = scmp.ne.s32.totalorder %s153, %s167
      %p169 = scmp.eq.s32.totalorder %s26, 0
      %p170 = por %p168, %p169
      %s172 = sadd.s32 %s171, 1
      %p175 = scmp.eq.s32.totalorder %s20, 1
      %p176 = scmp.ne.s32.totalorder %s171, %s173
      %p177 = scmp.eq.s32.totalorder %s20, 0
      %p178 = por %p176, %p177
      %p179 = scmp.ne.s32.totalorder %s171, %s173
      %p180 = scmp.eq.s32.totalorder %s25, 1
      %p181 = por %p179, %p180
      %p182 = scmp.ne.s32.totalorder %s173, %s174
      %p183 = scmp.eq.s32.totalorder %s25, 0
      %p184 = por %p182, %p183
      %p185 = scmp.ne.s32.totalorder %s173, %s174
      %p186 = scmp.eq.s32.totalorder %s26, 1
      %p187 = por %p185, %p186
      %p189 = scmp.ne.s32.totalorder %s174, %s188
      %p190 = scmp.eq.s32.totalorder %s26, 0
      %p191 = por %p189, %p190
      %s193 = sadd.s32 %s192, 1
      %p196 = scmp.eq.s32.totalorder %s20, 1
      %p197 = scmp.ne.s32.totalorder %s192, %s194
      %p198 = scmp.eq.s32.totalorder %s20, 0
      %p199 = por %p197, %p198
      %p200 = scmp.ne.s32.totalorder %s192, %s194
      %p201 = scmp.eq.s32.totalorder %s25, 1
      %p202 = por %p200, %p201
      %p203 = scmp.ne.s32.totalorder %s194, %s195
      %p204 = scmp.eq.s32.totalorder %s25, 0
      %p205 = por %p203, %p204
      %p206 = scmp.ne.s32.totalorder %s194, %s195
      %p207 = scmp.eq.s32.totalorder %s26, 1
      %p208 = por %p206, %p207
      %p210 = scmp.ne.s32.totalorder %s195, %s209
      %p211 = scmp.eq.s32.totalorder %s26, 0
      %p212 = por %p210, %p211
      %s214 = sadd.s32 %s213, 1
      %p217 = scmp.eq.s32.totalorder %s20, 1
      %p218 = scmp.ne.s32.totalorder %s213, %s215
      %p219 = scmp.eq.s32.totalorder %s20, 0
      %p220 = por %p218, %p219
      %p221 = scmp.ne.s32.totalorder %s213, %s215
      %p222 = scmp.eq.s32.totalorder %s25, 1
      %p223 = por %p221, %p222
      %p224 = scmp.ne.s32.totalorder %s215, %s216
      %p225 = scmp.eq.s32.totalorder %s25, 0
      %p226 = por %p224, %p225
      %p227 = scmp.ne.s32.totalorder %s215, %s216
      %p228 = scmp.eq.s32.totalorder %s26, 1
      %p229 = por %p227, %p228
      %p231 = scmp.ne.s32.totalorder %s216, %s230
      %p232 = scmp.eq.s32.totalorder %s26, 0
      %p233 = por %p231, %p232
      %s235 = sadd.s32 %s234, 1
      %p238 = scmp.eq.s32.totalorder %s20, 1
      %p239 = scmp.ne.s32.totalorder %s234, %s236
      %p240 = scmp.eq.s32.totalorder %s20, 0
      %p241 = por %p239, %p240
      %p242 = scmp.ne.s32.totalorder %s234, %s236
      %p243 = scmp.eq.s32.totalorder %s25, 1
      %p244 = por %p242, %p243
      %p245 = scmp.ne.s32.totalorder %s236, %s237
      %p246 = scmp.eq.s32.totalorder %s25, 0
      %p247 = por %p245, %p246
      %p248 = scmp.ne.s32.totalorder %s236, %s237
      %p249 = scmp.eq.s32.totalorder %s26, 1
      %p250 = por %p248, %p249
      %p252 = scmp.ne.s32.totalorder %s237, %s251
      %p253 = scmp.eq.s32.totalorder %s26, 0
      %p254 = por %p252, %p253
      %s256 = sadd.s32 %s255, 1
      %p259 = scmp.eq.s32.totalorder %s20, 1
      %p260 = scmp.ne.s32.totalorder %s255, %s257
      %p261 = scmp.eq.s32.totalorder %s20, 0
      %p262 = por %p260, %p261
      %p263 = scmp.ne.s32.totalorder %s255, %s257
      %p264 = scmp.eq.s32.totalorder %s25, 1
      %p265 = por %p263, %p264
      %p266 = scmp.ne.s32.totalorder %s257, %s258
      %p267 = scmp.eq.s32.totalorder %s25, 0
      %p268 = por %p266, %p267
      %p269 = scmp.ne.s32.totalorder %s257, %s258
      %p270 = scmp.eq.s32.totalorder %s26, 1
      %p271 = por %p269, %p270
      %p273 = scmp.ne.s32.totalorder %s258, %s272
      %p274 = scmp.eq.s32.totalorder %s26, 0
      %p275 = por %p273, %p274
      %s276 = ssub.s32 %s27, %s39
      %s277 = ssub.s32 %s28, %s35
      %s278 = sor.u32 %s276, %s277
      %p279 = scmp.eq.s32.totalorder %s278, 0
      %s281 = sadd.s32 %s280, 1
      %s282 = scalar_select %p279, %s280, %s281
      %p285 = pneg %p279
      %p286 = scmp.eq.s32.totalorder %s20, 1
      %p287 = por %p285, %p286
      %p288 = scmp.ne.s32.totalorder %s280, %s283
      %p289 = scmp.eq.s32.totalorder %s20, 0
      %p290 = por %p288, %p289
      %p291 = scmp.ne.s32.totalorder %s280, %s283
      %p292 = scmp.eq.s32.totalorder %s25, 1
      %p293 = por %p291, %p292
      %p294 = scmp.ne.s32.totalorder %s283, %s284
      %p295 = scmp.eq.s32.totalorder %s25, 0
      %p296 = por %p294, %p295
      %p297 = scmp.ne.s32.totalorder %s283, %s284
      %p298 = scmp.eq.s32.totalorder %s26, 1
      %p299 = por %p297, %p298
      %p301 = scmp.ne.s32.totalorder %s284, %s300
      %p302 = scmp.eq.s32.totalorder %s26, 0
      %p303 = por %p301, %p302
      %p304 = scmp.le.s32.totalorder 1, %s20
      %p305 = scmp.lt.s32.totalorder %s20, 3
      %p306 = pnand %p304, %p305
      %p307 = pneg %p306
      // Predicated region
      $region9: #{tpu_custom_call.1} parent=5 // pred_check
        _
      $region10: #{tpu_custom_call.1} parent=5 // pred_check_branch
        %309 = sbr.rel (%p306) target = $region12
      $region11: #{tpu_custom_call.1} parent=5 // pred_region
        %s310 = ssub.s32 %s20, 1
        // Predicated region
        $region13: #{tpu_custom_call.1} parent=11 // pred_check
          %p311 = pneg %p79
        $region14: #{tpu_custom_call.1} parent=11 // pred_check_branch
          %313 = sbr.rel (%p311) target = $region16
        $region15: #{tpu_custom_call.1} parent=11 // pred_region
          _
        $region16: #{tpu_custom_call.1} parent=11 // pred_fallthru
          _
        // Predicated region
        $region17: #{tpu_custom_call.1} parent=11 // pred_check
          %p314 = pneg %p100
        $region18: #{tpu_custom_call.1} parent=11 // pred_check_branch
          %316 = sbr.rel (%p314) target = $region20
        $region19: #{tpu_custom_call.1} parent=11 // pred_region
          _
        $region20: #{tpu_custom_call.1} parent=11 // pred_fallthru
          _
        // Predicated region
        $region21: #{tpu_custom_call.1} parent=11 // pred_check
          %p317 = pneg %p121
        $region22: #{tpu_custom_call.1} parent=11 // pred_check_branch
          %319 = sbr.rel (%p317) target = $region24
        $region23: #{tpu_custom_call.1} parent=11 // pred_region
          _
        $region24: #{tpu_custom_call.1} parent=11 // pred_fallthru
          _
        // Predicated region
        $region25: #{tpu_custom_call.1} parent=11 // pred_check
          %p320 = pneg %p142
        $region26: #{tpu_custom_call.1} parent=11 // pred_check_branch
          %322 = sbr.rel (%p320) target = $region28
        $region27: #{tpu_custom_call.1} parent=11 // pred_region
          _
        $region28: #{tpu_custom_call.1} parent=11 // pred_fallthru
          _
        // Predicated region
        $region29: #{tpu_custom_call.1} parent=11 // pred_check
          %p323 = pneg %p163
        $region30: #{tpu_custom_call.1} parent=11 // pred_check_branch
          %325 = sbr.rel (%p323) target = $region32
        $region31: #{tpu_custom_call.1} parent=11 // pred_region
          _
        $region32: #{tpu_custom_call.1} parent=11 // pred_fallthru
          _
        // Predicated region
        $region33: #{tpu_custom_call.1} parent=11 // pred_check
          %p326 = pneg %p184
        $region34: #{tpu_custom_call.1} parent=11 // pred_check_branch
          %328 = sbr.rel (%p326) target = $region36
        $region35: #{tpu_custom_call.1} parent=11 // pred_region
          _
        $region36: #{tpu_custom_call.1} parent=11 // pred_fallthru
          _
        // Predicated region
        $region37: #{tpu_custom_call.1} parent=11 // pred_check
          %p329 = pneg %p205
        $region38: #{tpu_custom_call.1} parent=11 // pred_check_branch
          %331 = sbr.rel (%p329) target = $region40
        $region39: #{tpu_custom_call.1} parent=11 // pred_region
          _
        $region40: #{tpu_custom_call.1} parent=11 // pred_fallthru
          _
        // Predicated region
        $region41: #{tpu_custom_call.1} parent=11 // pred_check
          %p332 = pneg %p226
        $region42: #{tpu_custom_call.1} parent=11 // pred_check_branch
          %334 = sbr.rel (%p332) target = $region44
        $region43: #{tpu_custom_call.1} parent=11 // pred_region
          _
        $region44: #{tpu_custom_call.1} parent=11 // pred_fallthru
          _
        // Predicated region
        $region45: #{tpu_custom_call.1} parent=11 // pred_check
          %p335 = pneg %p247
        $region46: #{tpu_custom_call.1} parent=11 // pred_check_branch
          %337 = sbr.rel (%p335) target = $region48
        $region47: #{tpu_custom_call.1} parent=11 // pred_region
          _
        $region48: #{tpu_custom_call.1} parent=11 // pred_fallthru
          _
        // Predicated region
        $region49: #{tpu_custom_call.1} parent=11 // pred_check
          %p338 = pneg %p268
        $region50: #{tpu_custom_call.1} parent=11 // pred_check_branch
          %340 = sbr.rel (%p338) target = $region52
        $region51: #{tpu_custom_call.1} parent=11 // pred_region
          _
        $region52: #{tpu_custom_call.1} parent=11 // pred_fallthru
          _
      $region12: #{tpu_custom_call.1} parent=5 // pred_fallthru
        _
      %p341 = scmp.lt.s32.totalorder %s20, 2
      // Predicated region
      $region53: #{tpu_custom_call.1} parent=5 // pred_check
        %p342 = pneg %p341
      $region54: #{tpu_custom_call.1} parent=5 // pred_check_branch
        %344 = sbr.rel (%p342) target = $region56
      $region55: #{tpu_custom_call.1} parent=5 // pred_region
        // Predicated region
        $region57: #{tpu_custom_call.1} parent=55 // pred_check
          %p345 = pneg %p52
        $region58: #{tpu_custom_call.1} parent=55 // pred_check_branch
          %347 = sbr.rel (%p345) target = $region60
        $region59: #{tpu_custom_call.1} parent=55 // pred_region
          %p348 = scmp.lt.s32.totalorder %s27, 1
          %s349 = scalar_select %p348, %s27, 1
          %s350 = smul.addr %s349, 8
          %s351 = scalar_lea.vmem %s0, %s350
        $region60: #{tpu_custom_call.1} parent=55 // pred_fallthru
          _
      $region56: #{tpu_custom_call.1} parent=5 // pred_fallthru
        _
      %p352 = scmp.le.s32.totalorder 1, %s20
      %p353 = scmp.lt.s32.totalorder %s20, 3
      %p354 = pnand %p352, %p353
      %p355 = pneg %p354
      // Predicated region
      $region61: #{tpu_custom_call.1} parent=5 // pred_check
        _
      $region62: #{tpu_custom_call.1} parent=5 // pred_check_branch
        %357 = sbr.rel (%p354) target = $region64
      $region63: #{tpu_custom_call.1} parent=5 // pred_region
        %s358 = ssub.s32 %s20, 1
        %p359 = scmp.lt.s32.totalorder %s29, 1
        %s360 = scalar_select %p359, %s29, 1
        %s361 = smul.addr %s360, 8
        %s362 = scalar_lea.vmem %s0, %s361
        %p363 = pneg %p58
        %p364 = pneg %p55
        %p365 = pneg %p79
        %p366 = pneg %p76
        %p367 = pneg %p100
        %p368 = pneg %p97
        %p369 = pneg %p121
        %p370 = pneg %p118
        %p371 = pneg %p142
        %p372 = pneg %p139
        %p373 = pneg %p163
        %p374 = pneg %p160
        %p375 = pneg %p184
        %p376 = pneg %p181
        %p377 = pneg %p205
        %p378 = pneg %p202
        %p379 = pneg %p226
        %p380 = pneg %p223
        %p381 = pneg %p247
        %p382 = pneg %p244
        %p383 = pneg %p268
        %p384 = pneg %p265
        %p385 = pneg %p296
        %p386 = pneg %p293
        %s387 = sand.u32 %s283, 1
        %s388 = scalar_lea.sflag [#allocation3], %s387
        %s389 = sand.u32 %s283, 1
        %s390 = smul.addr %s389, 8
        %s391 = scalar_lea.vmem [#allocation2], %s390
        %p392 = scmp.lt.s32.totalorder %s29, 1
        %s393 = scalar_select %p392, %s29, 1
        %s394 = smul.addr %s393, 8
        %s395 = scalar_lea.vmem %s0, %s394
        %v397 = vld [vmem:[%s1] sm:$0x1]
        %v398 = vld [vmem:[%s2] sm:$0x1]
        %v399 = vld [vmem:[%s395] sm:$0xff]
        %vm400 = vcmask 261120
        %v401 = vsel %vm400, %v399, 0.0
        %402 = vadd.xlane.f32.xlu0 %v401
        %v403 = vpop.xlane.xlu0 %402
        %v404 = vrcp.pop 32.0
        %v405 = vmul.f32 %v403, %v404
        %v406 = vsub.f32 %v399, %v405
        %v407 = vmul.f32 %v406, %v406
        %v408 = vsel %vm400, %v407, 0.0
        %409 = vadd.xlane.f32.xlu0 %v408
        %v410 = vpop.xlane.xlu0 %409
        %v411 = vmul.f32 %v410, %v404
        %v412 = vadd.f32 %v411, 1e-05
        %v413 = vrsqrt.pop %v412
        %v414 = vmul.f32 %v406, %v413
        %v416 = vlaneseq
        %v417 = vshrl.u32 %v416, 7
        %v418 = vsub.s32 0, %v417
        %v419 = vrot.slane %v397, %v418
        %v421 = vmul.f32 %v414, %v419
        %v423 = vlaneseq
        %v424 = vshrl.u32 %v423, 7
        %v425 = vsub.s32 0, %v424
        %v426 = vrot.slane %v398, %v425
        %v428 = vadd.f32 %v421, %v426
        %v429 = vpack.c.bf16 %v428, %v428
        %v430 = vld [vmem:[%s3] sm:$0xf]
        %v431 = vld [vmem:[%s3 + $0x4] sm:$0xf]
        %v432 = vld [vmem:[%s3 + $0x8] sm:$0xf]
        %v433 = vld [vmem:[%s3 + $0xc] sm:$0xf]
        %v434 = vld [vmem:[%s4] sm:$0x1]
        %v436 = vlaneseq
        %v437 = vshrl.u32 %v436, 7
        %v438 = vsub.s32 0, %v437
        %v439 = vrot.slane %v434, %v438
        %v445 = vunpack.c.l.b16 %v430
        %v446 = vunpack.c.l.b16 %v431
        %v447 = vunpack.c.l.b16 %v432
        %v448 = vunpack.c.l.b16 %v433
        %v449 = vpack.c.b16 %v446, %v445
        %v450 = vpack.c.b16 %v448, %v447
        %v454 = vsel %vm400, %v429, 0
        %456 = vmatprep.subr.bf16.mxu0 0
        %457 = vmatpush1.bf16.msra.mxu0 0
        %458 = vmatprep.subr.bf16.mxu0 0
        %459 = vmatpush1.bf16.msra.mxu0 0
        %460 = vmatprep.subr.bf16.mxu0 0
        %461 = vmatpush1.bf16.msra.mxu0 0
        %462 = vmatprep.subr.bf16.mxu0 0
        %463 = vmatpush1.bf16.msra.mxu0 0
        %464 = vmatprep.subr.bf16.mxu0 0
        %465 = vmatpush1.bf16.msra.mxu0 0
        %466 = vmatprep.subr.bf16.mxu0 0
        %467 = vmatpush1.bf16.msra.mxu0 0
        %468 = vmatprep.subr.bf16.mxu0 0
        %469 = vmatpush1.bf16.msra.mxu0 %v450
        %470 = vmatprep.subr.bf16.mxu0 0
        %471 = vmatpush1.bf16.msra.mxu0 %v449
        %472 = vmatprep.subr.bf16.mxu0 0
        %473 = vmatpush2.bf16.msra.mxu0 0
        %474 = vmatprep.subr.bf16.mxu0 0
        %475 = vmatpush2.bf16.msra.mxu0 0
        %476 = vmatprep.subr.bf16.mxu0 0
        %477 = vmatpush2.bf16.msra.mxu0 0
        %478 = vmatprep.subr.bf16.mxu0 0
        %479 = vmatpush2.bf16.msra.mxu0 0
        %480 = vmatprep.subr.bf16.mxu0 0
        %481 = vmatpush2.bf16.msra.mxu0 0
        %482 = vmatprep.subr.bf16.mxu0 0
        %483 = vmatpush2.bf16.msra.mxu0 0
        %484 = vmatprep.subr.bf16.mxu0 0
        %485 = vmatpush2.bf16.msra.mxu0 0
        %486 = vmatprep.subr.bf16.mxu0 0
        %487 = vmatpush2.bf16.msra.mxu0 0
        %488 = vmatprep.mubr.bf16.mxu0 0
        %489 = vmatmul.mubr.bf16.gmra.mxu0 %v454
        %v490 = vpop.f32.mrf.mxu0
        %v491 = vadd.f32 %v439, %v490
        %v492 = vpop.f32.mrf.mxu0
        %v493 = vpop.f32.mrf.mxu0
        %v494 = vpop.f32.mrf.mxu0
        %495 = vdwg.mxu0
        %v496 = vld [vmem:[%s5] sm:$0xf]
        %v497 = vld [vmem:[%s5 + $0x4] sm:$0xf]
        %v498 = vld [vmem:[%s5 + $0x8] sm:$0xf]
        %v499 = vld [vmem:[%s5 + $0xc] sm:$0xf]
        %v500 = vld [vmem:[%s6] sm:$0x1]
        %v502 = vlaneseq
        %v503 = vshrl.u32 %v502, 7
        %v504 = vsub.s32 0, %v503
        %v505 = vrot.slane %v500, %v504
        %v511 = vunpack.c.l.b16 %v496
        %v512 = vunpack.c.l.b16 %v497
        %v513 = vunpack.c.l.b16 %v498
        %v514 = vunpack.c.l.b16 %v499
        %v515 = vpack.c.b16 %v512, %v511
        %v516 = vpack.c.b16 %v514, %v513
        %519 = vmatprep.subr.bf16.mxu0 0
        %520 = vmatpush1.bf16.msra.mxu0 0
        %521 = vmatprep.subr.bf16.mxu0 0
        %522 = vmatpush1.bf16.msra.mxu0 0
        %523 = vmatprep.subr.bf16.mxu0 0
        %524 = vmatpush1.bf16.msra.mxu0 0
        %525 = vmatprep.subr.bf16.mxu0 0
        %526 = vmatpush1.bf16.msra.mxu0 0
        %527 = vmatprep.subr.bf16.mxu0 0
        %528 = vmatpush1.bf16.msra.mxu0 0
        %529 = vmatprep.subr.bf16.mxu0 0
        %530 = vmatpush1.bf16.msra.mxu0 0
        %531 = vmatprep.subr.bf16.mxu0 0
        %532 = vmatpush1.bf16.msra.mxu0 %v516
        %533 = vmatprep.subr.bf16.mxu0 0
        %534 = vmatpush1.bf16.msra.mxu0 %v515
        %535 = vmatprep.subr.bf16.mxu0 0
        %536 = vmatpush2.bf16.msra.mxu0 0
        %537 = vmatprep.subr.bf16.mxu0 0
        %538 = vmatpush2.bf16.msra.mxu0 0
        %539 = vmatprep.subr.bf16.mxu0 0
        %540 = vmatpush2.bf16.msra.mxu0 0
        %541 = vmatprep.subr.bf16.mxu0 0
        %542 = vmatpush2.bf16.msra.mxu0 0
        %543 = vmatprep.subr.bf16.mxu0 0
        %544 = vmatpush2.bf16.msra.mxu0 0
        %545 = vmatprep.subr.bf16.mxu0 0
        %546 = vmatpush2.bf16.msra.mxu0 0
        %547 = vmatprep.subr.bf16.mxu0 0
        %548 = vmatpush2.bf16.msra.mxu0 0
        %549 = vmatprep.subr.bf16.mxu0 0
        %550 = vmatpush2.bf16.msra.mxu0 0
        %551 = vmatprep.mubr.bf16.mxu0 0
        %552 = vmatmul.mubr.bf16.gmra.mxu0 %v454
        %v553 = vpop.f32.mrf.mxu0
        %v554 = vadd.f32 %v505, %v553
        %v555 = vpop.f32.mrf.mxu0
        %v556 = vpop.f32.mrf.mxu0
        %v557 = vpop.f32.mrf.mxu0
        %558 = vdwg.mxu0
        %v559 = vld [vmem:[%s7] sm:$0xf]
        %v560 = vld [vmem:[%s7 + $0x4] sm:$0xf]
        %v561 = vld [vmem:[%s7 + $0x8] sm:$0xf]
        %v562 = vld [vmem:[%s7 + $0xc] sm:$0xf]
        %v563 = vld [vmem:[%s8] sm:$0x1]
        %v565 = vlaneseq
        %v566 = vshrl.u32 %v565, 7
        %v567 = vsub.s32 0, %v566
        %v568 = vrot.slane %v563, %v567
        %v574 = vunpack.c.l.b16 %v559
        %v575 = vunpack.c.l.b16 %v560
        %v576 = vunpack.c.l.b16 %v561
        %v577 = vunpack.c.l.b16 %v562
        %v578 = vpack.c.b16 %v575, %v574
        %v579 = vpack.c.b16 %v577, %v576
        %582 = vmatprep.subr.bf16.mxu0 0
        %583 = vmatpush1.bf16.msra.mxu0 0
        %584 = vmatprep.subr.bf16.mxu0 0
        %585 = vmatpush1.bf16.msra.mxu0 0
        %586 = vmatprep.subr.bf16.mxu0 0
        %587 = vmatpush1.bf16.msra.mxu0 0
        %588 = vmatprep.subr.bf16.mxu0 0
        %589 = vmatpush1.bf16.msra.mxu0 0
        %590 = vmatprep.subr.bf16.mxu0 0
        %591 = vmatpush1.bf16.msra.mxu0 0
        %592 = vmatprep.subr.bf16.mxu0 0
        %593 = vmatpush1.bf16.msra.mxu0 0
        %594 = vmatprep.subr.bf16.mxu0 0
        %595 = vmatpush1.bf16.msra.mxu0 %v579
        %596 = vmatprep.subr.bf16.mxu0 0
        %597 = vmatpush1.bf16.msra.mxu0 %v578
        %598 = vmatprep.subr.bf16.mxu0 0
        %599 = vmatpush2.bf16.msra.mxu0 0
        %600 = vmatprep.subr.bf16.mxu0 0
        %601 = vmatpush2.bf16.msra.mxu0 0
        %602 = vmatprep.subr.bf16.mxu0 0
        %603 = vmatpush2.bf16.msra.mxu0 0
        %604 = vmatprep.subr.bf16.mxu0 0
        %605 = vmatpush2.bf16.msra.mxu0 0
        %606 = vmatprep.subr.bf16.mxu0 0
        %607 = vmatpush2.bf16.msra.mxu0 0
        %608 = vmatprep.subr.bf16.mxu0 0
        %609 = vmatpush2.bf16.msra.mxu0 0
        %610 = vmatprep.subr.bf16.mxu0 0
        %611 = vmatpush2.bf16.msra.mxu0 0
        %612 = vmatprep.subr.bf16.mxu0 0
        %613 = vmatpush2.bf16.msra.mxu0 0
        %614 = vmatprep.mubr.bf16.mxu0 0
        %615 = vmatmul.mubr.bf16.gmra.mxu0 %v454
        %v616 = vpop.f32.mrf.mxu0
        %v617 = vadd.f32 %v568, %v616
        %v618 = vpop.f32.mrf.mxu0
        %v619 = vpop.f32.mrf.mxu0
        %v620 = vpop.f32.mrf.mxu0
        %621 = vdwg.mxu0
        %v622 = vpack.c.bf16 %v491, %v491
        %v623 = vpack.c.bf16 %v554, %v554
        %vm624 = vcmask 64512
        %v626 = vsel %vm624, %v622, 0
        %v629 = vsel %vm624, %v623, 0
        %631 = vmatprep.subr.bf16.mxu0 0
        %632 = vmatpush1.bf16.xpose.msra.mxu0 0
        %633 = vmatprep.subr.bf16.mxu0 0
        %634 = vmatpush1.bf16.xpose.msra.mxu0 0
        %635 = vmatprep.subr.bf16.mxu0 0
        %636 = vmatpush1.bf16.xpose.msra.mxu0 0
        %637 = vmatprep.subr.bf16.mxu0 0
        %638 = vmatpush1.bf16.xpose.msra.mxu0 0
        %639 = vmatprep.subr.bf16.mxu0 0
        %640 = vmatpush1.bf16.xpose.msra.mxu0 0
        %641 = vmatprep.subr.bf16.mxu0 0
        %642 = vmatpush1.bf16.xpose.msra.mxu0 0
        %643 = vmatprep.subr.bf16.mxu0 0
        %644 = vmatpush1.bf16.xpose.msra.mxu0 0
        %645 = vmatprep.subr.bf16.mxu0 0
        %646 = vmatpush1.bf16.xpose.msra.mxu0 %v629
        %647 = vmatprep.subr.bf16.mxu0 0
        %648 = vmatpush2.bf16.xpose.msra.mxu0 0
        %649 = vmatprep.subr.bf16.mxu0 0
        %650 = vmatpush2.bf16.xpose.msra.mxu0 0
        %651 = vmatprep.subr.bf16.mxu0 0
        %652 = vmatpush2.bf16.xpose.msra.mxu0 0
        %653 = vmatprep.subr.bf16.mxu0 0
        %654 = vmatpush2.bf16.xpose.msra.mxu0 0
        %655 = vmatprep.subr.bf16.mxu0 0
        %656 = vmatpush2.bf16.xpose.msra.mxu0 0
        %657 = vmatprep.subr.bf16.mxu0 0
        %658 = vmatpush2.bf16.xpose.msra.mxu0 0
        %659 = vmatprep.subr.bf16.mxu0 0
        %660 = vmatpush2.bf16.xpose.msra.mxu0 0
        %661 = vmatprep.subr.bf16.mxu0 0
        %662 = vmatpush2.bf16.xpose.msra.mxu0 0
        %663 = vmatprep.mubr.bf16.mxu0 0
        %664 = vmatmul.mubr.bf16.gmra.mxu0 %v626
        %v665 = vpop.f32.mrf.mxu0
        %v666 = vadd.f32 0.0, %v665
        %v667 = vpop.f32.mrf.mxu0
        %v668 = vpop.f32.mrf.mxu0
        %v669 = vpop.f32.mrf.mxu0
        %670 = vdwg.mxu0
        %v671 = vsel %vm624, %v666, -inf
        %672 = vmax.xlane.f32.xlu0 %v671
        %v673 = vpop.xlane.xlu0 %672
        %v674 = vsub.f32 %v666, %v673
        %v675 = vmul.f32 %v674, 1.442695
        %v676 = vpow.pop %v675
        %v677 = vsel %vm624, %v676, 0.0
        %678 = vadd.xlane.f32.xlu0 %v677
        %v679 = vpop.xlane.xlu0 %678
        %v680 = vrcp.pop %v679
        %v681 = vmul.f32 %v676, %v680
        %v682 = vpack.c.bf16 %v681, %v681
        %v683 = vpack.c.bf16 %v617, %v617
        %v685 = vsel %vm624, %v682, 0
        %vm687 = vcmask 1043456
        %v689 = vsel %vm687, %v683, 0
        %691 = vmatprep.subr.bf16.mxu0 0
        %692 = vmatpush1.bf16.msra.mxu0 0
        %693 = vmatprep.subr.bf16.mxu0 0
        %694 = vmatpush1.bf16.msra.mxu0 0
        %695 = vmatprep.subr.bf16.mxu0 0
        %696 = vmatpush1.bf16.msra.mxu0 0
        %697 = vmatprep.subr.bf16.mxu0 0
        %698 = vmatpush1.bf16.msra.mxu0 0
        %699 = vmatprep.subr.bf16.mxu0 0
        %700 = vmatpush1.bf16.msra.mxu0 0
        %701 = vmatprep.subr.bf16.mxu0 0
        %702 = vmatpush1.bf16.msra.mxu0 0
        %703 = vmatprep.subr.bf16.mxu0 0
        %704 = vmatpush1.bf16.msra.mxu0 0
        %705 = vmatprep.subr.bf16.mxu0 0
        %706 = vmatpush1.bf16.msra.mxu0 %v689
        %707 = vmatprep.subr.bf16.mxu0 0
        %708 = vmatpush2.bf16.msra.mxu0 0
        %709 = vmatprep.subr.bf16.mxu0 0
        %710 = vmatpush2.bf16.msra.mxu0 0
        %711 = vmatprep.subr.bf16.mxu0 0
        %712 = vmatpush2.bf16.msra.mxu0 0
        %713 = vmatprep.subr.bf16.mxu0 0
        %714 = vmatpush2.bf16.msra.mxu0 0
        %715 = vmatprep.subr.bf16.mxu0 0
        %716 = vmatpush2.bf16.msra.mxu0 0
        %717 = vmatprep.subr.bf16.mxu0 0
        %718 = vmatpush2.bf16.msra.mxu0 0
        %719 = vmatprep.subr.bf16.mxu0 0
        %720 = vmatpush2.bf16.msra.mxu0 0
        %721 = vmatprep.subr.bf16.mxu0 0
        %722 = vmatpush2.bf16.msra.mxu0 0
        %723 = vmatprep.mubr.bf16.mxu0 0
        %724 = vmatmul.mubr.bf16.gmra.mxu0 %v685
        %v725 = vpop.f32.mrf.mxu0
        %v726 = vadd.f32 0.0, %v725
        %v727 = vpop.f32.mrf.mxu0
        %v728 = vpop.f32.mrf.mxu0
        %v729 = vpop.f32.mrf.mxu0
        %730 = vdwg.mxu0
        %v731 = vpack.c.bf16 %v726, %v726
        %v732 = vld [vmem:[%s9] sm:$0xf]
        %s733 = scalar_lea.vmem %s3, 16
        %v734 = vld [vmem:[%s733] sm:$0xf]
        %v735 = vld [vmem:[%s733 + $0x4] sm:$0xf]
        %v736 = vld [vmem:[%s733 + $0x8] sm:$0xf]
        %v737 = vld [vmem:[%s733 + $0xc] sm:$0xf]
        %s738 = scalar_lea.vmem %s4, 1
        %v739 = vld [vmem:[%s738] sm:$0x1]
        %v741 = vlaneseq
        %v742 = vshrl.u32 %v741, 7
        %v743 = vsub.s32 0, %v742
        %v744 = vrot.slane %v739, %v743
        %v750 = vunpack.c.l.b16 %v734
        %v751 = vunpack.c.l.b16 %v735
        %v752 = vunpack.c.l.b16 %v736
        %v753 = vunpack.c.l.b16 %v737
        %v754 = vpack.c.b16 %v751, %v750
        %v755 = vpack.c.b16 %v753, %v752
        %758 = vmatprep.subr.bf16.mxu0 0
        %759 = vmatpush1.bf16.msra.mxu0 0
        %760 = vmatprep.subr.bf16.mxu0 0
        %761 = vmatpush1.bf16.msra.mxu0 0
        %762 = vmatprep.subr.bf16.mxu0 0
        %763 = vmatpush1.bf16.msra.mxu0 0
        %764 = vmatprep.subr.bf16.mxu0 0
        %765 = vmatpush1.bf16.msra.mxu0 0
        %766 = vmatprep.subr.bf16.mxu0 0
        %767 = vmatpush1.bf16.msra.mxu0 0
        %768 = vmatprep.subr.bf16.mxu0 0
        %769 = vmatpush1.bf16.msra.mxu0 0
        %770 = vmatprep.subr.bf16.mxu0 0
        %771 = vmatpush1.bf16.msra.mxu0 %v755
        %772 = vmatprep.subr.bf16.mxu0 0
        %773 = vmatpush1.bf16.msra.mxu0 %v754
        %774 = vmatprep.subr.bf16.mxu0 0
        %775 = vmatpush2.bf16.msra.mxu0 0
        %776 = vmatprep.subr.bf16.mxu0 0
        %777 = vmatpush2.bf16.msra.mxu0 0
        %778 = vmatprep.subr.bf16.mxu0 0
        %779 = vmatpush2.bf16.msra.mxu0 0
        %780 = vmatprep.subr.bf16.mxu0 0
        %781 = vmatpush2.bf16.msra.mxu0 0
        %782 = vmatprep.subr.bf16.mxu0 0
        %783 = vmatpush2.bf16.msra.mxu0 0
        %784 = vmatprep.subr.bf16.mxu0 0
        %785 = vmatpush2.bf16.msra.mxu0 0
        %786 = vmatprep.subr.bf16.mxu0 0
        %787 = vmatpush2.bf16.msra.mxu0 0
        %788 = vmatprep.subr.bf16.mxu0 0
        %789 = vmatpush2.bf16.msra.mxu0 0
        %790 = vmatprep.mubr.bf16.mxu0 0
        %791 = vmatmul.mubr.bf16.gmra.mxu0 %v454
        %v792 = vpop.f32.mrf.mxu0
        %v793 = vadd.f32 %v744, %v792
        %v794 = vpop.f32.mrf.mxu0
        %v795 = vpop.f32.mrf.mxu0
        %v796 = vpop.f32.mrf.mxu0
        %797 = vdwg.mxu0
        %s798 = scalar_lea.vmem %s5, 16
        %v799 = vld [vmem:[%s798] sm:$0xf]
        %v800 = vld [vmem:[%s798 + $0x4] sm:$0xf]
        %v801 = vld [vmem:[%s798 + $0x8] sm:$0xf]
        %v802 = vld [vmem:[%s798 + $0xc] sm:$0xf]
        %s803 = scalar_lea.vmem %s6, 1
        %v804 = vld [vmem:[%s803] sm:$0x1]
        %v806 = vlaneseq
        %v807 = vshrl.u32 %v806, 7
        %v808 = vsub.s32 0, %v807
        %v809 = vrot.slane %v804, %v808
        %v815 = vunpack.c.l.b16 %v799
        %v816 = vunpack.c.l.b16 %v800
        %v817 = vunpack.c.l.b16 %v801
        %v818 = vunpack.c.l.b16 %v802
        %v819 = vpack.c.b16 %v816, %v815
        %v820 = vpack.c.b16 %v818, %v817
        %823 = vmatprep.subr.bf16.mxu0 0
        %824 = vmatpush1.bf16.msra.mxu0 0
        %825 = vmatprep.subr.bf16.mxu0 0
        %826 = vmatpush1.bf16.msra.mxu0 0
        %827 = vmatprep.subr.bf16.mxu0 0
        %828 = vmatpush1.bf16.msra.mxu0 0
        %829 = vmatprep.subr.bf16.mxu0 0
        %830 = vmatpush1.bf16.msra.mxu0 0
        %831 = vmatprep.subr.bf16.mxu0 0
        %832 = vmatpush1.bf16.msra.mxu0 0
        %833 = vmatprep.subr.bf16.mxu0 0
        %834 = vmatpush1.bf16.msra.mxu0 0
        %835 = vmatprep.subr.bf16.mxu0 0
        %836 = vmatpush1.bf16.msra.mxu0 %v820
        %837 = vmatprep.subr.bf16.mxu0 0
        %838 = vmatpush1.bf16.msra.mxu0 %v819
        %839 = vmatprep.subr.bf16.mxu0 0
        %840 = vmatpush2.bf16.msra.mxu0 0
        %841 = vmatprep.subr.bf16.mxu0 0
        %842 = vmatpush2.bf16.msra.mxu0 0
        %843 = vmatprep.subr.bf16.mxu0 0
        %844 = vmatpush2.bf16.msra.mxu0 0
        %845 = vmatprep.subr.bf16.mxu0 0
        %846 = vmatpush2.bf16.msra.mxu0 0
        %847 = vmatprep.subr.bf16.mxu0 0
        %848 = vmatpush2.bf16.msra.mxu0 0
        %849 = vmatprep.subr.bf16.mxu0 0
        %850 = vmatpush2.bf16.msra.mxu0 0
        %851 = vmatprep.subr.bf16.mxu0 0
        %852 = vmatpush2.bf16.msra.mxu0 0
        %853 = vmatprep.subr.bf16.mxu0 0
        %854 = vmatpush2.bf16.msra.mxu0 0
        %855 = vmatprep.mubr.bf16.mxu0 0
        %856 = vmatmul.mubr.bf16.gmra.mxu0 %v454
        %v857 = vpop.f32.mrf.mxu0
        %v858 = vadd.f32 %v809, %v857
        %v859 = vpop.f32.mrf.mxu0
        %v860 = vpop.f32.mrf.mxu0
        %v861 = vpop.f32.mrf.mxu0
        %862 = vdwg.mxu0
        %s863 = scalar_lea.vmem %s7, 16
        %v864 = vld [vmem:[%s863] sm:$0xf]
        %v865 = vld [vmem:[%s863 + $0x4] sm:$0xf]
        %v866 = vld [vmem:[%s863 + $0x8] sm:$0xf]
        %v867 = vld [vmem:[%s863 + $0xc] sm:$0xf]
        %s868 = scalar_lea.vmem %s8, 1
        %v869 = vld [vmem:[%s868] sm:$0x1]
        %v871 = vlaneseq
        %v872 = vshrl.u32 %v871, 7
        %v873 = vsub.s32 0, %v872
        %v874 = vrot.slane %v869, %v873
        %v880 = vunpack.c.l.b16 %v864
        %v881 = vunpack.c.l.b16 %v865
        %v882 = vunpack.c.l.b16 %v866
        %v883 = vunpack.c.l.b16 %v867
        %v884 = vpack.c.b16 %v881, %v880
        %v885 = vpack.c.b16 %v883, %v882
        %888 = vmatprep.subr.bf16.mxu0 0
        %889 = vmatpush1.bf16.msra.mxu0 0
        %890 = vmatprep.subr.bf16.mxu0 0
        %891 = vmatpush1.bf16.msra.mxu0 0
        %892 = vmatprep.subr.bf16.mxu0 0
        %893 = vmatpush1.bf16.msra.mxu0 0
        %894 = vmatprep.subr.bf16.mxu0 0
        %895 = vmatpush1.bf16.msra.mxu0 0
        %896 = vmatprep.subr.bf16.mxu0 0
        %897 = vmatpush1.bf16.msra.mxu0 0
        %898 = vmatprep.subr.bf16.mxu0 0
        %899 = vmatpush1.bf16.msra.mxu0 0
        %900 = vmatprep.subr.bf16.mxu0 0
        %901 = vmatpush1.bf16.msra.mxu0 %v885
        %902 = vmatprep.subr.bf16.mxu0 0
        %903 = vmatpush1.bf16.msra.mxu0 %v884
        %904 = vmatprep.subr.bf16.mxu0 0
        %905 = vmatpush2.bf16.msra.mxu0 0
        %906 = vmatprep.subr.bf16.mxu0 0
        %907 = vmatpush2.bf16.msra.mxu0 0
        %908 = vmatprep.subr.bf16.mxu0 0
        %909 = vmatpush2.bf16.msra.mxu0 0
        %910 = vmatprep.subr.bf16.mxu0 0
        %911 = vmatpush2.bf16.msra.mxu0 0
        %912 = vmatprep.subr.bf16.mxu0 0
        %913 = vmatpush2.bf16.msra.mxu0 0
        %914 = vmatprep.subr.bf16.mxu0 0
        %915 = vmatpush2.bf16.msra.mxu0 0
        %916 = vmatprep.subr.bf16.mxu0 0
        %917 = vmatpush2.bf16.msra.mxu0 0
        %918 = vmatprep.subr.bf16.mxu0 0
        %919 = vmatpush2.bf16.msra.mxu0 0
        %920 = vmatprep.mubr.bf16.mxu0 0
        %921 = vmatmul.mubr.bf16.gmra.mxu0 %v454
        %v922 = vpop.f32.mrf.mxu0
        %v923 = vadd.f32 %v874, %v922
        %v924 = vpop.f32.mrf.mxu0
        %v925 = vpop.f32.mrf.mxu0
        %v926 = vpop.f32.mrf.mxu0
        %927 = vdwg.mxu0
        %v928 = vpack.c.bf16 %v793, %v793
        %v929 = vpack.c.bf16 %v858, %v858
        %v931 = vsel %vm624, %v928, 0
        %v934 = vsel %vm624, %v929, 0
        %936 = vmatprep.subr.bf16.mxu0 0
        %937 = vmatpush1.bf16.xpose.msra.mxu0 0
        %938 = vmatprep.subr.bf16.mxu0 0
        %939 = vmatpush1.bf16.xpose.msra.mxu0 0
        %940 = vmatprep.subr.bf16.mxu0 0
        %941 = vmatpush1.bf16.xpose.msra.mxu0 0
        %942 = vmatprep.subr.bf16.mxu0 0
        %943 = vmatpush1.bf16.xpose.msra.mxu0 0
        %944 = vmatprep.subr.bf16.mxu0 0
        %945 = vmatpush1.bf16.xpose.msra.mxu0 0
        %946 = vmatprep.subr.bf16.mxu0 0
        %947 = vmatpush1.bf16.xpose.msra.mxu0 0
        %948 = vmatprep.subr.bf16.mxu0 0
        %949 = vmatpush1.bf16.xpose.msra.mxu0 0
        %950 = vmatprep.subr.bf16.mxu0 0
        %951 = vmatpush1.bf16.xpose.msra.mxu0 %v934
        %952 = vmatprep.subr.bf16.mxu0 0
        %953 = vmatpush2.bf16.xpose.msra.mxu0 0
        %954 = vmatprep.subr.bf16.mxu0 0
        %955 = vmatpush2.bf16.xpose.msra.mxu0 0
        %956 = vmatprep.subr.bf16.mxu0 0
        %957 = vmatpush2.bf16.xpose.msra.mxu0 0
        %958 = vmatprep.subr.bf16.mxu0 0
        %959 = vmatpush2.bf16.xpose.msra.mxu0 0
        %960 = vmatprep.subr.bf16.mxu0 0
        %961 = vmatpush2.bf16.xpose.msra.mxu0 0
        %962 = vmatprep.subr.bf16.mxu0 0
        %963 = vmatpush2.bf16.xpose.msra.mxu0 0
        %964 = vmatprep.subr.bf16.mxu0 0
        %965 = vmatpush2.bf16.xpose.msra.mxu0 0
        %966 = vmatprep.subr.bf16.mxu0 0
        %967 = vmatpush2.bf16.xpose.msra.mxu0 0
        %968 = vmatprep.mubr.bf16.mxu0 0
        %969 = vmatmul.mubr.bf16.gmra.mxu0 %v931
        %v970 = vpop.f32.mrf.mxu0
        %v971 = vadd.f32 0.0, %v970
        %v972 = vpop.f32.mrf.mxu0
        %v973 = vpop.f32.mrf.mxu0
        %v974 = vpop.f32.mrf.mxu0
        %975 = vdwg.mxu0
        %v976 = vsel %vm624, %v971, -inf
        %977 = vmax.xlane.f32.xlu0 %v976
        %v978 = vpop.xlane.xlu0 %977
        %v979 = vsub.f32 %v971, %v978
        %v980 = vmul.f32 %v979, 1.442695
        %v981 = vpow.pop %v980
        %v982 = vsel %vm624, %v981, 0.0
        %983 = vadd.xlane.f32.xlu0 %v982
        %v984 = vpop.xlane.xlu0 %983
        %v985 = vrcp.pop %v984
        %v986 = vmul.f32 %v981, %v985
        %v987 = vpack.c.bf16 %v986, %v986
        %v988 = vpack.c.bf16 %v923, %v923
        %v990 = vsel %vm624, %v987, 0
        %v993 = vsel %vm687, %v988, 0
        %995 = vmatprep.subr.bf16.mxu0 0
        %996 = vmatpush1.bf16.msra.mxu0 0
        %997 = vmatprep.subr.bf16.mxu0 0
        %998 = vmatpush1.bf16.msra.mxu0 0
        %999 = vmatprep.subr.bf16.mxu0 0
        %1000 = vmatpush1.bf16.msra.mxu0 0
        %1001 = vmatprep.subr.bf16.mxu0 0
        %1002 = vmatpush1.bf16.msra.mxu0 0
        %1003 = vmatprep.subr.bf16.mxu0 0
        %1004 = vmatpush1.bf16.msra.mxu0 0
        %1005 = vmatprep.subr.bf16.mxu0 0
        %1006 = vmatpush1.bf16.msra.mxu0 0
        %1007 = vmatprep.subr.bf16.mxu0 0
        %1008 = vmatpush1.bf16.msra.mxu0 0
        %1009 = vmatprep.subr.bf16.mxu0 0
        %1010 = vmatpush1.bf16.msra.mxu0 %v993
        %1011 = vmatprep.subr.bf16.mxu0 0
        %1012 = vmatpush2.bf16.msra.mxu0 0
        %1013 = vmatprep.subr.bf16.mxu0 0
        %1014 = vmatpush2.bf16.msra.mxu0 0
        %1015 = vmatprep.subr.bf16.mxu0 0
        %1016 = vmatpush2.bf16.msra.mxu0 0
        %1017 = vmatprep.subr.bf16.mxu0 0
        %1018 = vmatpush2.bf16.msra.mxu0 0
        %1019 = vmatprep.subr.bf16.mxu0 0
        %1020 = vmatpush2.bf16.msra.mxu0 0
        %1021 = vmatprep.subr.bf16.mxu0 0
        %1022 = vmatpush2.bf16.msra.mxu0 0
        %1023 = vmatprep.subr.bf16.mxu0 0
        %1024 = vmatpush2.bf16.msra.mxu0 0
        %1025 = vmatprep.subr.bf16.mxu0 0
        %1026 = vmatpush2.bf16.msra.mxu0 0
        %1027 = vmatprep.mubr.bf16.mxu0 0
        %1028 = vmatmul.mubr.bf16.gmra.mxu0 %v990
        %v1029 = vpop.f32.mrf.mxu0
        %v1030 = vadd.f32 0.0, %v1029
        %v1031 = vpop.f32.mrf.mxu0
        %v1032 = vpop.f32.mrf.mxu0
        %v1033 = vpop.f32.mrf.mxu0
        %1034 = vdwg.mxu0
        %v1035 = vpack.c.bf16 %v1030, %v1030
        %s1036 = scalar_lea.vmem %s9, 4
        %v1037 = vld [vmem:[%s1036] sm:$0xf]
        %v1039 = vsel %vm624, %v1035, 0
        %v1042 = vsel %vm687, %v1037, 0
        %1044 = vmatprep.subr.bf16.mxu0 0
        %1045 = vmatpush1.bf16.msra.mxu0 0
        %1046 = vmatprep.subr.bf16.mxu0 0
        %1047 = vmatpush1.bf16.msra.mxu0 0
        %1048 = vmatprep.subr.bf16.mxu0 0
        %1049 = vmatpush1.bf16.msra.mxu0 0
        %1050 = vmatprep.subr.bf16.mxu0 0
        %1051 = vmatpush1.bf16.msra.mxu0 0
        %1052 = vmatprep.subr.bf16.mxu0 0
        %1053 = vmatpush1.bf16.msra.mxu0 0
        %1054 = vmatprep.subr.bf16.mxu0 0
        %1055 = vmatpush1.bf16.msra.mxu0 0
        %1056 = vmatprep.subr.bf16.mxu0 0
        %1057 = vmatpush1.bf16.msra.mxu0 0
        %1058 = vmatprep.subr.bf16.mxu0 0
        %1059 = vmatpush1.bf16.msra.mxu0 %v1042
        %1060 = vmatprep.subr.bf16.mxu0 0
        %1061 = vmatpush2.bf16.msra.mxu0 0
        %1062 = vmatprep.subr.bf16.mxu0 0
        %1063 = vmatpush2.bf16.msra.mxu0 0
        %1064 = vmatprep.subr.bf16.mxu0 0
        %1065 = vmatpush2.bf16.msra.mxu0 0
        %1066 = vmatprep.subr.bf16.mxu0 0
        %1067 = vmatpush2.bf16.msra.mxu0 0
        %1068 = vmatprep.subr.bf16.mxu0 0
        %1069 = vmatpush2.bf16.msra.mxu0 0
        %1070 = vmatprep.subr.bf16.mxu0 0
        %1071 = vmatpush2.bf16.msra.mxu0 0
        %1072 = vmatprep.subr.bf16.mxu0 0
        %1073 = vmatpush2.bf16.msra.mxu0 0
        %1074 = vmatprep.subr.bf16.mxu0 0
        %1075 = vmatpush2.bf16.msra.mxu0 0
        %1076 = vmatprep.mubr.bf16.mxu0 0
        %1077 = vmatmul.mubr.bf16.gmra.mxu0 %v1039
        %v1078 = vpop.f32.mrf.mxu0
        %v1079 = vadd.f32 0.0, %v1078
        %v1080 = vpop.f32.mrf.mxu0
        %v1081 = vpop.f32.mrf.mxu0
        %v1082 = vpop.f32.mrf.mxu0
        %1083 = vdwg.mxu0
        %v1085 = vsel %vm624, %v731, 0
        %v1088 = vsel %vm687, %v732, 0
        %1090 = vmatprep.subr.bf16.mxu0 0
        %1091 = vmatpush1.bf16.msra.mxu0 0
        %1092 = vmatprep.subr.bf16.mxu0 0
        %1093 = vmatpush1.bf16.msra.mxu0 0
        %1094 = vmatprep.subr.bf16.mxu0 0
        %1095 = vmatpush1.bf16.msra.mxu0 0
        %1096 = vmatprep.subr.bf16.mxu0 0
        %1097 = vmatpush1.bf16.msra.mxu0 0
        %1098 = vmatprep.subr.bf16.mxu0 0
        %1099 = vmatpush1.bf16.msra.mxu0 0
        %1100 = vmatprep.subr.bf16.mxu0 0
        %1101 = vmatpush1.bf16.msra.mxu0 0
        %1102 = vmatprep.subr.bf16.mxu0 0
        %1103 = vmatpush1.bf16.msra.mxu0 0
        %1104 = vmatprep.subr.bf16.mxu0 0
        %1105 = vmatpush1.bf16.msra.mxu0 %v1088
        %1106 = vmatprep.subr.bf16.mxu0 0
        %1107 = vmatpush2.bf16.msra.mxu0 0
        %1108 = vmatprep.subr.bf16.mxu0 0
        %1109 = vmatpush2.bf16.msra.mxu0 0
        %1110 = vmatprep.subr.bf16.mxu0 0
        %1111 = vmatpush2.bf16.msra.mxu0 0
        %1112 = vmatprep.subr.bf16.mxu0 0
        %1113 = vmatpush2.bf16.msra.mxu0 0
        %1114 = vmatprep.subr.bf16.mxu0 0
        %1115 = vmatpush2.bf16.msra.mxu0 0
        %1116 = vmatprep.subr.bf16.mxu0 0
        %1117 = vmatpush2.bf16.msra.mxu0 0
        %1118 = vmatprep.subr.bf16.mxu0 0
        %1119 = vmatpush2.bf16.msra.mxu0 0
        %1120 = vmatprep.subr.bf16.mxu0 0
        %1121 = vmatpush2.bf16.msra.mxu0 0
        %1122 = vmatprep.mubr.bf16.mxu0 0
        %1123 = vmatmul.mubr.bf16.gmra.mxu0 %v1085
        %v1124 = vpop.f32.mrf.mxu0
        %v1125 = vadd.f32 %v1079, %v1124
        %v1126 = vpop.f32.mrf.mxu0
        %v1127 = vpop.f32.mrf.mxu0
        %v1128 = vpop.f32.mrf.mxu0
        %1129 = vdwg.mxu0
        %s1130 = scalar_lea.vmem %s3, 32
        %v1131 = vld [vmem:[%s1130] sm:$0xf]
        %v1132 = vld [vmem:[%s1130 + $0x4] sm:$0xf]
        %v1133 = vld [vmem:[%s1130 + $0x8] sm:$0xf]
        %v1134 = vld [vmem:[%s1130 + $0xc] sm:$0xf]
        %s1135 = scalar_lea.vmem %s4, 2
        %v1136 = vld [vmem:[%s1135] sm:$0x1]
        %v1138 = vlaneseq
        %v1139 = vshrl.u32 %v1138, 7
        %v1140 = vsub.s32 0, %v1139
        %v1141 = vrot.slane %v1136, %v1140
        %v1147 = vunpack.c.l.b16 %v1131
        %v1148 = vunpack.c.l.b16 %v1132
        %v1149 = vunpack.c.l.b16 %v1133
        %v1150 = vunpack.c.l.b16 %v1134
        %v1151 = vpack.c.b16 %v1148, %v1147
        %v1152 = vpack.c.b16 %v1150, %v1149
        %1155 = vmatprep.subr.bf16.mxu0 0
        %1156 = vmatpush1.bf16.msra.mxu0 0
        %1157 = vmatprep.subr.bf16.mxu0 0
        %1158 = vmatpush1.bf16.msra.mxu0 0
        %1159 = vmatprep.subr.bf16.mxu0 0
        %1160 = vmatpush1.bf16.msra.mxu0 0
        %1161 = vmatprep.subr.bf16.mxu0 0
        %1162 = vmatpush1.bf16.msra.mxu0 0
        %1163 = vmatprep.subr.bf16.mxu0 0
        %1164 = vmatpush1.bf16.msra.mxu0 0
        %1165 = vmatprep.subr.bf16.mxu0 0
        %1166 = vmatpush1.bf16.msra.mxu0 0
        %1167 = vmatprep.subr.bf16.mxu0 0
        %1168 = vmatpush1.bf16.msra.mxu0 %v1152
        %1169 = vmatprep.subr.bf16.mxu0 0
        %1170 = vmatpush1.bf16.msra.mxu0 %v1151
        %1171 = vmatprep.subr.bf16.mxu0 0
        %1172 = vmatpush2.bf16.msra.mxu0 0
        %1173 = vmatprep.subr.bf16.mxu0 0
        %1174 = vmatpush2.bf16.msra.mxu0 0
        %1175 = vmatprep.subr.bf16.mxu0 0
        %1176 = vmatpush2.bf16.msra.mxu0 0
        %1177 = vmatprep.subr.bf16.mxu0 0
        %1178 = vmatpush2.bf16.msra.mxu0 0
        %1179 = vmatprep.subr.bf16.mxu0 0
        %1180 = vmatpush2.bf16.msra.mxu0 0
        %1181 = vmatprep.subr.bf16.mxu0 0
        %1182 = vmatpush2.bf16.msra.mxu0 0
        %1183 = vmatprep.subr.bf16.mxu0 0
        %1184 = vmatpush2.bf16.msra.mxu0 0
        %1185 = vmatprep.subr.bf16.mxu0 0
        %1186 = vmatpush2.bf16.msra.mxu0 0
        %1187 = vmatprep.mubr.bf16.mxu0 0
        %1188 = vmatmul.mubr.bf16.gmra.mxu0 %v454
        %v1189 = vpop.f32.mrf.mxu0
        %v1190 = vadd.f32 %v1141, %v1189
        %v1191 = vpop.f32.mrf.mxu0
        %v1192 = vpop.f32.mrf.mxu0
        %v1193 = vpop.f32.mrf.mxu0
        %1194 = vdwg.mxu0
        %s1195 = scalar_lea.vmem %s5, 32
        %v1196 = vld [vmem:[%s1195] sm:$0xf]
        %v1197 = vld [vmem:[%s1195 + $0x4] sm:$0xf]
        %v1198 = vld [vmem:[%s1195 + $0x8] sm:$0xf]
        %v1199 = vld [vmem:[%s1195 + $0xc] sm:$0xf]
        %s1200 = scalar_lea.vmem %s6, 2
        %v1201 = vld [vmem:[%s1200] sm:$0x1]
        %v1203 = vlaneseq
        %v1204 = vshrl.u32 %v1203, 7
        %v1205 = vsub.s32 0, %v1204
        %v1206 = vrot.slane %v1201, %v1205
        %v1212 = vunpack.c.l.b16 %v1196
        %v1213 = vunpack.c.l.b16 %v1197
        %v1214 = vunpack.c.l.b16 %v1198
        %v1215 = vunpack.c.l.b16 %v1199
        %v1216 = vpack.c.b16 %v1213, %v1212
        %v1217 = vpack.c.b16 %v1215, %v1214
        %1220 = vmatprep.subr.bf16.mxu0 0
        %1221 = vmatpush1.bf16.msra.mxu0 0
        %1222 = vmatprep.subr.bf16.mxu0 0
        %1223 = vmatpush1.bf16.msra.mxu0 0
        %1224 = vmatprep.subr.bf16.mxu0 0
        %1225 = vmatpush1.bf16.msra.mxu0 0
        %1226 = vmatprep.subr.bf16.mxu0 0
        %1227 = vmatpush1.bf16.msra.mxu0 0
        %1228 = vmatprep.subr.bf16.mxu0 0
        %1229 = vmatpush1.bf16.msra.mxu0 0
        %1230 = vmatprep.subr.bf16.mxu0 0
        %1231 = vmatpush1.bf16.msra.mxu0 0
        %1232 = vmatprep.subr.bf16.mxu0 0
        %1233 = vmatpush1.bf16.msra.mxu0 %v1217
        %1234 = vmatprep.subr.bf16.mxu0 0
        %1235 = vmatpush1.bf16.msra.mxu0 %v1216
        %1236 = vmatprep.subr.bf16.mxu0 0
        %1237 = vmatpush2.bf16.msra.mxu0 0
        %1238 = vmatprep.subr.bf16.mxu0 0
        %1239 = vmatpush2.bf16.msra.mxu0 0
        %1240 = vmatprep.subr.bf16.mxu0 0
        %1241 = vmatpush2.bf16.msra.mxu0 0
        %1242 = vmatprep.subr.bf16.mxu0 0
        %1243 = vmatpush2.bf16.msra.mxu0 0
        %1244 = vmatprep.subr.bf16.mxu0 0
        %1245 = vmatpush2.bf16.msra.mxu0 0
        %1246 = vmatprep.subr.bf16.mxu0 0
        %1247 = vmatpush2.bf16.msra.mxu0 0
        %1248 = vmatprep.subr.bf16.mxu0 0
        %1249 = vmatpush2.bf16.msra.mxu0 0
        %1250 = vmatprep.subr.bf16.mxu0 0
        %1251 = vmatpush2.bf16.msra.mxu0 0
        %1252 = vmatprep.mubr.bf16.mxu0 0
        %1253 = vmatmul.mubr.bf16.gmra.mxu0 %v454
        %v1254 = vpop.f32.mrf.mxu0
        %v1255 = vadd.f32 %v1206, %v1254
        %v1256 = vpop.f32.mrf.mxu0
        %v1257 = vpop.f32.mrf.mxu0
        %v1258 = vpop.f32.mrf.mxu0
        %1259 = vdwg.mxu0
        %s1260 = scalar_lea.vmem %s7, 32
        %v1261 = vld [vmem:[%s1260] sm:$0xf]
        %v1262 = vld [vmem:[%s1260 + $0x4] sm:$0xf]
        %v1263 = vld [vmem:[%s1260 + $0x8] sm:$0xf]
        %v1264 = vld [vmem:[%s1260 + $0xc] sm:$0xf]
        %s1265 = scalar_lea.vmem %s8, 2
        %v1266 = vld [vmem:[%s1265] sm:$0x1]
        %v1268 = vlaneseq
        %v1269 = vshrl.u32 %v1268, 7
        %v1270 = vsub.s32 0, %v1269
        %v1271 = vrot.slane %v1266, %v1270
        %v1277 = vunpack.c.l.b16 %v1261
        %v1278 = vunpack.c.l.b16 %v1262
        %v1279 = vunpack.c.l.b16 %v1263
        %v1280 = vunpack.c.l.b16 %v1264
        %v1281 = vpack.c.b16 %v1278, %v1277
        %v1282 = vpack.c.b16 %v1280, %v1279
        %1285 = vmatprep.subr.bf16.mxu0 0
        %1286 = vmatpush1.bf16.msra.mxu0 0
        %1287 = vmatprep.subr.bf16.mxu0 0
        %1288 = vmatpush1.bf16.msra.mxu0 0
        %1289 = vmatprep.subr.bf16.mxu0 0
        %1290 = vmatpush1.bf16.msra.mxu0 0
        %1291 = vmatprep.subr.bf16.mxu0 0
        %1292 = vmatpush1.bf16.msra.mxu0 0
        %1293 = vmatprep.subr.bf16.mxu0 0
        %1294 = vmatpush1.bf16.msra.mxu0 0
        %1295 = vmatprep.subr.bf16.mxu0 0
        %1296 = vmatpush1.bf16.msra.mxu0 0
        %1297 = vmatprep.subr.bf16.mxu0 0
        %1298 = vmatpush1.bf16.msra.mxu0 %v1282
        %1299 = vmatprep.subr.bf16.mxu0 0
        %1300 = vmatpush1.bf16.msra.mxu0 %v1281
        %1301 = vmatprep.subr.bf16.mxu0 0
        %1302 = vmatpush2.bf16.msra.mxu0 0
        %1303 = vmatprep.subr.bf16.mxu0 0
        %1304 = vmatpush2.bf16.msra.mxu0 0
        %1305 = vmatprep.subr.bf16.mxu0 0
        %1306 = vmatpush2.bf16.msra.mxu0 0
        %1307 = vmatprep.subr.bf16.mxu0 0
        %1308 = vmatpush2.bf16.msra.mxu0 0
        %1309 = vmatprep.subr.bf16.mxu0 0
        %1310 = vmatpush2.bf16.msra.mxu0 0
        %1311 = vmatprep.subr.bf16.mxu0 0
        %1312 = vmatpush2.bf16.msra.mxu0 0
        %1313 = vmatprep.subr.bf16.mxu0 0
        %1314 = vmatpush2.bf16.msra.mxu0 0
        %1315 = vmatprep.subr.bf16.mxu0 0
        %1316 = vmatpush2.bf16.msra.mxu0 0
        %1317 = vmatprep.mubr.bf16.mxu0 0
        %1318 = vmatmul.mubr.bf16.gmra.mxu0 %v454
        %v1319 = vpop.f32.mrf.mxu0
        %v1320 = vadd.f32 %v1271, %v1319
        %v1321 = vpop.f32.mrf.mxu0
        %v1322 = vpop.f32.mrf.mxu0
        %v1323 = vpop.f32.mrf.mxu0
        %1324 = vdwg.mxu0
        %v1325 = vpack.c.bf16 %v1190, %v1190
        %v1326 = vpack.c.bf16 %v1255, %v1255
        %v1328 = vsel %vm624, %v1325, 0
        %v1331 = vsel %vm624, %v1326, 0
        %1333 = vmatprep.subr.bf16.mxu0 0
        %1334 = vmatpush1.bf16.xpose.msra.mxu0 0
        %1335 = vmatprep.subr.bf16.mxu0 0
        %1336 = vmatpush1.bf16.xpose.msra.mxu0 0
        %1337 = vmatprep.subr.bf16.mxu0 0
        %1338 = vmatpush1.bf16.xpose.msra.mxu0 0
        %1339 = vmatprep.subr.bf16.mxu0 0
        %1340 = vmatpush1.bf16.xpose.msra.mxu0 0
        %1341 = vmatprep.subr.bf16.mxu0 0
        %1342 = vmatpush1.bf16.xpose.msra.mxu0 0
        %1343 = vmatprep.subr.bf16.mxu0 0
        %1344 = vmatpush1.bf16.xpose.msra.mxu0 0
        %1345 = vmatprep.subr.bf16.mxu0 0
        %1346 = vmatpush1.bf16.xpose.msra.mxu0 0
        %1347 = vmatprep.subr.bf16.mxu0 0
        %1348 = vmatpush1.bf16.xpose.msra.mxu0 %v1331
        %1349 = vmatprep.subr.bf16.mxu0 0
        %1350 = vmatpush2.bf16.xpose.msra.mxu0 0
        %1351 = vmatprep.subr.bf16.mxu0 0
        %1352 = vmatpush2.bf16.xpose.msra.mxu0 0
        %1353 = vmatprep.subr.bf16.mxu0 0
        %1354 = vmatpush2.bf16.xpose.msra.mxu0 0
        %1355 = vmatprep.subr.bf16.mxu0 0
        %1356 = vmatpush2.bf16.xpose.msra.mxu0 0
        %1357 = vmatprep.subr.bf16.mxu0 0
        %1358 = vmatpush2.bf16.xpose.msra.mxu0 0
        %1359 = vmatprep.subr.bf16.mxu0 0
        %1360 = vmatpush2.bf16.xpose.msra.mxu0 0
        %1361 = vmatprep.subr.bf16.mxu0 0
        %1362 = vmatpush2.bf16.xpose.msra.mxu0 0
        %1363 = vmatprep.subr.bf16.mxu0 0
        %1364 = vmatpush2.bf16.xpose.msra.mxu0 0
        %1365 = vmatprep.mubr.bf16.mxu0 0
        %1366 = vmatmul.mubr.bf16.gmra.mxu0 %v1328
        %v1367 = vpop.f32.mrf.mxu0
        %v1368 = vadd.f32 0.0, %v1367
        %v1369 = vpop.f32.mrf.mxu0
        %v1370 = vpop.f32.mrf.mxu0
        %v1371 = vpop.f32.mrf.mxu0
        %1372 = vdwg.mxu0
        %v1373 = vsel %vm624, %v1368, -inf
        %1374 = vmax.xlane.f32.xlu0 %v1373
        %v1375 = vpop.xlane.xlu0 %1374
        %v1376 = vsub.f32 %v1368, %v1375
        %v1377 = vmul.f32 %v1376, 1.442695
        %v1378 = vpow.pop %v1377
        %v1379 = vsel %vm624, %v1378, 0.0
        %1380 = vadd.xlane.f32.xlu0 %v1379
        %v1381 = vpop.xlane.xlu0 %1380
        %v1382 = vrcp.pop %v1381
        %v1383 = vmul.f32 %v1378, %v1382
        %v1384 = vpack.c.bf16 %v1383, %v1383
        %v1385 = vpack.c.bf16 %v1320, %v1320
        %v1387 = vsel %vm624, %v1384, 0
        %v1390 = vsel %vm687, %v1385, 0
        %1392 = vmatprep.subr.bf16.mxu0 0
        %1393 = vmatpush1.bf16.msra.mxu0 0
        %1394 = vmatprep.subr.bf16.mxu0 0
        %1395 = vmatpush1.bf16.msra.mxu0 0
        %1396 = vmatprep.subr.bf16.mxu0 0
        %1397 = vmatpush1.bf16.msra.mxu0 0
        %1398 = vmatprep.subr.bf16.mxu0 0
        %1399 = vmatpush1.bf16.msra.mxu0 0
        %1400 = vmatprep.subr.bf16.mxu0 0
        %1401 = vmatpush1.bf16.msra.mxu0 0
        %1402 = vmatprep.subr.bf16.mxu0 0
        %1403 = vmatpush1.bf16.msra.mxu0 0
        %1404 = vmatprep.subr.bf16.mxu0 0
        %1405 = vmatpush1.bf16.msra.mxu0 0
        %1406 = vmatprep.subr.bf16.mxu0 0
        %1407 = vmatpush1.bf16.msra.mxu0 %v1390
        %1408 = vmatprep.subr.bf16.mxu0 0
        %1409 = vmatpush2.bf16.msra.mxu0 0
        %1410 = vmatprep.subr.bf16.mxu0 0
        %1411 = vmatpush2.bf16.msra.mxu0 0
        %1412 = vmatprep.subr.bf16.mxu0 0
        %1413 = vmatpush2.bf16.msra.mxu0 0
        %1414 = vmatprep.subr.bf16.mxu0 0
        %1415 = vmatpush2.bf16.msra.mxu0 0
        %1416 = vmatprep.subr.bf16.mxu0 0
        %1417 = vmatpush2.bf16.msra.mxu0 0
        %1418 = vmatprep.subr.bf16.mxu0 0
        %1419 = vmatpush2.bf16.msra.mxu0 0
        %1420 = vmatprep.subr.bf16.mxu0 0
        %1421 = vmatpush2.bf16.msra.mxu0 0
        %1422 = vmatprep.subr.bf16.mxu0 0
        %1423 = vmatpush2.bf16.msra.mxu0 0
        %1424 = vmatprep.mubr.bf16.mxu0 0
        %1425 = vmatmul.mubr.bf16.gmra.mxu0 %v1387
        %v1426 = vpop.f32.mrf.mxu0
        %v1427 = vadd.f32 0.0, %v1426
        %v1428 = vpop.f32.mrf.mxu0
        %v1429 = vpop.f32.mrf.mxu0
        %v1430 = vpop.f32.mrf.mxu0
        %1431 = vdwg.mxu0
        %v1432 = vpack.c.bf16 %v1427, %v1427
        %s1433 = scalar_lea.vmem %s9, 8
        %v1434 = vld [vmem:[%s1433] sm:$0xf]
        %v1436 = vsel %vm624, %v1432, 0
        %v1439 = vsel %vm687, %v1434, 0
        %1441 = vmatprep.subr.bf16.mxu0 0
        %1442 = vmatpush1.bf16.msra.mxu0 0
        %1443 = vmatprep.subr.bf16.mxu0 0
        %1444 = vmatpush1.bf16.msra.mxu0 0
        %1445 = vmatprep.subr.bf16.mxu0 0
        %1446 = vmatpush1.bf16.msra.mxu0 0
        %1447 = vmatprep.subr.bf16.mxu0 0
        %1448 = vmatpush1.bf16.msra.mxu0 0
        %1449 = vmatprep.subr.bf16.mxu0 0
        %1450 = vmatpush1.bf16.msra.mxu0 0
        %1451 = vmatprep.subr.bf16.mxu0 0
        %1452 = vmatpush1.bf16.msra.mxu0 0
        %1453 = vmatprep.subr.bf16.mxu0 0
        %1454 = vmatpush1.bf16.msra.mxu0 0
        %1455 = vmatprep.subr.bf16.mxu0 0
        %1456 = vmatpush1.bf16.msra.mxu0 %v1439
        %1457 = vmatprep.subr.bf16.mxu0 0
        %1458 = vmatpush2.bf16.msra.mxu0 0
        %1459 = vmatprep.subr.bf16.mxu0 0
        %1460 = vmatpush2.bf16.msra.mxu0 0
        %1461 = vmatprep.subr.bf16.mxu0 0
        %1462 = vmatpush2.bf16.msra.mxu0 0
        %1463 = vmatprep.subr.bf16.mxu0 0
        %1464 = vmatpush2.bf16.msra.mxu0 0
        %1465 = vmatprep.subr.bf16.mxu0 0
        %1466 = vmatpush2.bf16.msra.mxu0 0
        %1467 = vmatprep.subr.bf16.mxu0 0
        %1468 = vmatpush2.bf16.msra.mxu0 0
        %1469 = vmatprep.subr.bf16.mxu0 0
        %1470 = vmatpush2.bf16.msra.mxu0 0
        %1471 = vmatprep.subr.bf16.mxu0 0
        %1472 = vmatpush2.bf16.msra.mxu0 0
        %1473 = vmatprep.mubr.bf16.mxu0 0
        %1474 = vmatmul.mubr.bf16.gmra.mxu0 %v1436
        %v1475 = vpop.f32.mrf.mxu0
        %v1476 = vadd.f32 0.0, %v1475
        %v1477 = vpop.f32.mrf.mxu0
        %v1478 = vpop.f32.mrf.mxu0
        %v1479 = vpop.f32.mrf.mxu0
        %1480 = vdwg.mxu0
        %v1481 = vadd.f32 %v1125, %v1476
        %s1482 = scalar_lea.vmem %s3, 48
        %v1483 = vld [vmem:[%s1482] sm:$0xf]
        %v1484 = vld [vmem:[%s1482 + $0x4] sm:$0xf]
        %v1485 = vld [vmem:[%s1482 + $0x8] sm:$0xf]
        %v1486 = vld [vmem:[%s1482 + $0xc] sm:$0xf]
        %s1487 = scalar_lea.vmem %s4, 3
        %v1488 = vld [vmem:[%s1487] sm:$0x1]
        %v1490 = vlaneseq
        %v1491 = vshrl.u32 %v1490, 7
        %v1492 = vsub.s32 0, %v1491
        %v1493 = vrot.slane %v1488, %v1492
        %v1499 = vunpack.c.l.b16 %v1483
        %v1500 = vunpack.c.l.b16 %v1484
        %v1501 = vunpack.c.l.b16 %v1485
        %v1502 = vunpack.c.l.b16 %v1486
        %v1503 = vpack.c.b16 %v1500, %v1499
        %v1504 = vpack.c.b16 %v1502, %v1501
        %1507 = vmatprep.subr.bf16.mxu0 0
        %1508 = vmatpush1.bf16.msra.mxu0 0
        %1509 = vmatprep.subr.bf16.mxu0 0
        %1510 = vmatpush1.bf16.msra.mxu0 0
        %1511 = vmatprep.subr.bf16.mxu0 0
        %1512 = vmatpush1.bf16.msra.mxu0 0
        %1513 = vmatprep.subr.bf16.mxu0 0
        %1514 = vmatpush1.bf16.msra.mxu0 0
        %1515 = vmatprep.subr.bf16.mxu0 0
        %1516 = vmatpush1.bf16.msra.mxu0 0
        %1517 = vmatprep.subr.bf16.mxu0 0
        %1518 = vmatpush1.bf16.msra.mxu0 0
        %1519 = vmatprep.subr.bf16.mxu0 0
        %1520 = vmatpush1.bf16.msra.mxu0 %v1504
        %1521 = vmatprep.subr.bf16.mxu0 0
        %1522 = vmatpush1.bf16.msra.mxu0 %v1503
        %1523 = vmatprep.subr.bf16.mxu0 0
        %1524 = vmatpush2.bf16.msra.mxu0 0
        %1525 = vmatprep.subr.bf16.mxu0 0
        %1526 = vmatpush2.bf16.msra.mxu0 0
        %1527 = vmatprep.subr.bf16.mxu0 0
        %1528 = vmatpush2.bf16.msra.mxu0 0
        %1529 = vmatprep.subr.bf16.mxu0 0
        %1530 = vmatpush2.bf16.msra.mxu0 0
        %1531 = vmatprep.subr.bf16.mxu0 0
        %1532 = vmatpush2.bf16.msra.mxu0 0
        %1533 = vmatprep.subr.bf16.mxu0 0
        %1534 = vmatpush2.bf16.msra.mxu0 0
        %1535 = vmatprep.subr.bf16.mxu0 0
        %1536 = vmatpush2.bf16.msra.mxu0 0
        %1537 = vmatprep.subr.bf16.mxu0 0
        %1538 = vmatpush2.bf16.msra.mxu0 0
        %1539 = vmatprep.mubr.bf16.mxu0 0
        %1540 = vmatmul.mubr.bf16.gmra.mxu0 %v454
        %v1541 = vpop.f32.mrf.mxu0
        %v1542 = vadd.f32 %v1493, %v1541
        %v1543 = vpop.f32.mrf.mxu0
        %v1544 = vpop.f32.mrf.mxu0
        %v1545 = vpop.f32.mrf.mxu0
        %1546 = vdwg.mxu0
        %s1547 = scalar_lea.vmem %s5, 48
        %v1548 = vld [vmem:[%s1547] sm:$0xf]
        %v1549 = vld [vmem:[%s1547 + $0x4] sm:$0xf]
        %v1550 = vld [vmem:[%s1547 + $0x8] sm:$0xf]
        %v1551 = vld [vmem:[%s1547 + $0xc] sm:$0xf]
        %s1552 = scalar_lea.vmem %s6, 3
        %v1553 = vld [vmem:[%s1552] sm:$0x1]
        %v1555 = vlaneseq
        %v1556 = vshrl.u32 %v1555, 7
        %v1557 = vsub.s32 0, %v1556
        %v1558 = vrot.slane %v1553, %v1557
        %v1564 = vunpack.c.l.b16 %v1548
        %v1565 = vunpack.c.l.b16 %v1549
        %v1566 = vunpack.c.l.b16 %v1550
        %v1567 = vunpack.c.l.b16 %v1551
        %v1568 = vpack.c.b16 %v1565, %v1564
        %v1569 = vpack.c.b16 %v1567, %v1566
        %1572 = vmatprep.subr.bf16.mxu0 0
        %1573 = vmatpush1.bf16.msra.mxu0 0
        %1574 = vmatprep.subr.bf16.mxu0 0
        %1575 = vmatpush1.bf16.msra.mxu0 0
        %1576 = vmatprep.subr.bf16.mxu0 0
        %1577 = vmatpush1.bf16.msra.mxu0 0
        %1578 = vmatprep.subr.bf16.mxu0 0
        %1579 = vmatpush1.bf16.msra.mxu0 0
        %1580 = vmatprep.subr.bf16.mxu0 0
        %1581 = vmatpush1.bf16.msra.mxu0 0
        %1582 = vmatprep.subr.bf16.mxu0 0
        %1583 = vmatpush1.bf16.msra.mxu0 0
        %1584 = vmatprep.subr.bf16.mxu0 0
        %1585 = vmatpush1.bf16.msra.mxu0 %v1569
        %1586 = vmatprep.subr.bf16.mxu0 0
        %1587 = vmatpush1.bf16.msra.mxu0 %v1568
        %1588 = vmatprep.subr.bf16.mxu0 0
        %1589 = vmatpush2.bf16.msra.mxu0 0
        %1590 = vmatprep.subr.bf16.mxu0 0
        %1591 = vmatpush2.bf16.msra.mxu0 0
        %1592 = vmatprep.subr.bf16.mxu0 0
        %1593 = vmatpush2.bf16.msra.mxu0 0
        %1594 = vmatprep.subr.bf16.mxu0 0
        %1595 = vmatpush2.bf16.msra.mxu0 0
        %1596 = vmatprep.subr.bf16.mxu0 0
        %1597 = vmatpush2.bf16.msra.mxu0 0
        %1598 = vmatprep.subr.bf16.mxu0 0
        %1599 = vmatpush2.bf16.msra.mxu0 0
        %1600 = vmatprep.subr.bf16.mxu0 0
        %1601 = vmatpush2.bf16.msra.mxu0 0
        %1602 = vmatprep.subr.bf16.mxu0 0
        %1603 = vmatpush2.bf16.msra.mxu0 0
        %1604 = vmatprep.mubr.bf16.mxu0 0
        %1605 = vmatmul.mubr.bf16.gmra.mxu0 %v454
        %v1606 = vpop.f32.mrf.mxu0
        %v1607 = vadd.f32 %v1558, %v1606
        %v1608 = vpop.f32.mrf.mxu0
        %v1609 = vpop.f32.mrf.mxu0
        %v1610 = vpop.f32.mrf.mxu0
        %1611 = vdwg.mxu0
        %s1612 = scalar_lea.vmem %s7, 48
        %v1613 = vld [vmem:[%s1612] sm:$0xf]
        %v1614 = vld [vmem:[%s1612 + $0x4] sm:$0xf]
        %v1615 = vld [vmem:[%s1612 + $0x8] sm:$0xf]
        %v1616 = vld [vmem:[%s1612 + $0xc] sm:$0xf]
        %s1617 = scalar_lea.vmem %s8, 3
        %v1618 = vld [vmem:[%s1617] sm:$0x1]
        %v1620 = vlaneseq
        %v1621 = vshrl.u32 %v1620, 7
        %v1622 = vsub.s32 0, %v1621
        %v1623 = vrot.slane %v1618, %v1622
        %v1629 = vunpack.c.l.b16 %v1613
        %v1630 = vunpack.c.l.b16 %v1614
        %v1631 = vunpack.c.l.b16 %v1615
        %v1632 = vunpack.c.l.b16 %v1616
        %v1633 = vpack.c.b16 %v1630, %v1629
        %v1634 = vpack.c.b16 %v1632, %v1631
        %1637 = vmatprep.subr.bf16.mxu0 0
        %1638 = vmatpush1.bf16.msra.mxu0 0
        %1639 = vmatprep.subr.bf16.mxu0 0
        %1640 = vmatpush1.bf16.msra.mxu0 0
        %1641 = vmatprep.subr.bf16.mxu0 0
        %1642 = vmatpush1.bf16.msra.mxu0 0
        %1643 = vmatprep.subr.bf16.mxu0 0
        %1644 = vmatpush1.bf16.msra.mxu0 0
        %1645 = vmatprep.subr.bf16.mxu0 0
        %1646 = vmatpush1.bf16.msra.mxu0 0
        %1647 = vmatprep.subr.bf16.mxu0 0
        %1648 = vmatpush1.bf16.msra.mxu0 0
        %1649 = vmatprep.subr.bf16.mxu0 0
        %1650 = vmatpush1.bf16.msra.mxu0 %v1634
        %1651 = vmatprep.subr.bf16.mxu0 0
        %1652 = vmatpush1.bf16.msra.mxu0 %v1633
        %1653 = vmatprep.subr.bf16.mxu0 0
        %1654 = vmatpush2.bf16.msra.mxu0 0
        %1655 = vmatprep.subr.bf16.mxu0 0
        %1656 = vmatpush2.bf16.msra.mxu0 0
        %1657 = vmatprep.subr.bf16.mxu0 0
        %1658 = vmatpush2.bf16.msra.mxu0 0
        %1659 = vmatprep.subr.bf16.mxu0 0
        %1660 = vmatpush2.bf16.msra.mxu0 0
        %1661 = vmatprep.subr.bf16.mxu0 0
        %1662 = vmatpush2.bf16.msra.mxu0 0
        %1663 = vmatprep.subr.bf16.mxu0 0
        %1664 = vmatpush2.bf16.msra.mxu0 0
        %1665 = vmatprep.subr.bf16.mxu0 0
        %1666 = vmatpush2.bf16.msra.mxu0 0
        %1667 = vmatprep.subr.bf16.mxu0 0
        %1668 = vmatpush2.bf16.msra.mxu0 0
        %1669 = vmatprep.mubr.bf16.mxu0 0
        %1670 = vmatmul.mubr.bf16.gmra.mxu0 %v454
        %v1671 = vpop.f32.mrf.mxu0
        %v1672 = vadd.f32 %v1623, %v1671
        %v1673 = vpop.f32.mrf.mxu0
        %v1674 = vpop.f32.mrf.mxu0
        %v1675 = vpop.f32.mrf.mxu0
        %1676 = vdwg.mxu0
        %v1677 = vpack.c.bf16 %v1542, %v1542
        %v1678 = vpack.c.bf16 %v1607, %v1607
        %v1680 = vsel %vm624, %v1677, 0
        %v1683 = vsel %vm624, %v1678, 0
        %1685 = vmatprep.subr.bf16.mxu0 0
        %1686 = vmatpush1.bf16.xpose.msra.mxu0 0
        %1687 = vmatprep.subr.bf16.mxu0 0
        %1688 = vmatpush1.bf16.xpose.msra.mxu0 0
        %1689 = vmatprep.subr.bf16.mxu0 0
        %1690 = vmatpush1.bf16.xpose.msra.mxu0 0
        %1691 = vmatprep.subr.bf16.mxu0 0
        %1692 = vmatpush1.bf16.xpose.msra.mxu0 0
        %1693 = vmatprep.subr.bf16.mxu0 0
        %1694 = vmatpush1.bf16.xpose.msra.mxu0 0
        %1695 = vmatprep.subr.bf16.mxu0 0
        %1696 = vmatpush1.bf16.xpose.msra.mxu0 0
        %1697 = vmatprep.subr.bf16.mxu0 0
        %1698 = vmatpush1.bf16.xpose.msra.mxu0 0
        %1699 = vmatprep.subr.bf16.mxu0 0
        %1700 = vmatpush1.bf16.xpose.msra.mxu0 %v1683
        %1701 = vmatprep.subr.bf16.mxu0 0
        %1702 = vmatpush2.bf16.xpose.msra.mxu0 0
        %1703 = vmatprep.subr.bf16.mxu0 0
        %1704 = vmatpush2.bf16.xpose.msra.mxu0 0
        %1705 = vmatprep.subr.bf16.mxu0 0
        %1706 = vmatpush2.bf16.xpose.msra.mxu0 0
        %1707 = vmatprep.subr.bf16.mxu0 0
        %1708 = vmatpush2.bf16.xpose.msra.mxu0 0
        %1709 = vmatprep.subr.bf16.mxu0 0
        %1710 = vmatpush2.bf16.xpose.msra.mxu0 0
        %1711 = vmatprep.subr.bf16.mxu0 0
        %1712 = vmatpush2.bf16.xpose.msra.mxu0 0
        %1713 = vmatprep.subr.bf16.mxu0 0
        %1714 = vmatpush2.bf16.xpose.msra.mxu0 0
        %1715 = vmatprep.subr.bf16.mxu0 0
        %1716 = vmatpush2.bf16.xpose.msra.mxu0 0
        %1717 = vmatprep.mubr.bf16.mxu0 0
        %1718 = vmatmul.mubr.bf16.gmra.mxu0 %v1680
        %v1719 = vpop.f32.mrf.mxu0
        %v1720 = vadd.f32 0.0, %v1719
        %v1721 = vpop.f32.mrf.mxu0
        %v1722 = vpop.f32.mrf.mxu0
        %v1723 = vpop.f32.mrf.mxu0
        %1724 = vdwg.mxu0
        %v1725 = vsel %vm624, %v1720, -inf
        %1726 = vmax.xlane.f32.xlu0 %v1725
        %v1727 = vpop.xlane.xlu0 %1726
        %v1728 = vsub.f32 %v1720, %v1727
        %v1729 = vmul.f32 %v1728, 1.442695
        %v1730 = vpow.pop %v1729
        %v1731 = vsel %vm624, %v1730, 0.0
        %1732 = vadd.xlane.f32.xlu0 %v1731
        %v1733 = vpop.xlane.xlu0 %1732
        %v1734 = vrcp.pop %v1733
        %v1735 = vmul.f32 %v1730, %v1734
        %v1736 = vpack.c.bf16 %v1735, %v1735
        %v1737 = vpack.c.bf16 %v1672, %v1672
        %v1739 = vsel %vm624, %v1736, 0
        %v1742 = vsel %vm687, %v1737, 0
        %1744 = vmatprep.subr.bf16.mxu0 0
        %1745 = vmatpush1.bf16.msra.mxu0 0
        %1746 = vmatprep.subr.bf16.mxu0 0
        %1747 = vmatpush1.bf16.msra.mxu0 0
        %1748 = vmatprep.subr.bf16.mxu0 0
        %1749 = vmatpush1.bf16.msra.mxu0 0
        %1750 = vmatprep.subr.bf16.mxu0 0
        %1751 = vmatpush1.bf16.msra.mxu0 0
        %1752 = vmatprep.subr.bf16.mxu0 0
        %1753 = vmatpush1.bf16.msra.mxu0 0
        %1754 = vmatprep.subr.bf16.mxu0 0
        %1755 = vmatpush1.bf16.msra.mxu0 0
        %1756 = vmatprep.subr.bf16.mxu0 0
        %1757 = vmatpush1.bf16.msra.mxu0 0
        %1758 = vmatprep.subr.bf16.mxu0 0
        %1759 = vmatpush1.bf16.msra.mxu0 %v1742
        %1760 = vmatprep.subr.bf16.mxu0 0
        %1761 = vmatpush2.bf16.msra.mxu0 0
        %1762 = vmatprep.subr.bf16.mxu0 0
        %1763 = vmatpush2.bf16.msra.mxu0 0
        %1764 = vmatprep.subr.bf16.mxu0 0
        %1765 = vmatpush2.bf16.msra.mxu0 0
        %1766 = vmatprep.subr.bf16.mxu0 0
        %1767 = vmatpush2.bf16.msra.mxu0 0
        %1768 = vmatprep.subr.bf16.mxu0 0
        %1769 = vmatpush2.bf16.msra.mxu0 0
        %1770 = vmatprep.subr.bf16.mxu0 0
        %1771 = vmatpush2.bf16.msra.mxu0 0
        %1772 = vmatprep.subr.bf16.mxu0 0
        %1773 = vmatpush2.bf16.msra.mxu0 0
        %1774 = vmatprep.subr.bf16.mxu0 0
        %1775 = vmatpush2.bf16.msra.mxu0 0
        %1776 = vmatprep.mubr.bf16.mxu0 0
        %1777 = vmatmul.mubr.bf16.gmra.mxu0 %v1739
        %v1778 = vpop.f32.mrf.mxu0
        %v1779 = vadd.f32 0.0, %v1778
        %v1780 = vpop.f32.mrf.mxu0
        %v1781 = vpop.f32.mrf.mxu0
        %v1782 = vpop.f32.mrf.mxu0
        %1783 = vdwg.mxu0
        %v1784 = vpack.c.bf16 %v1779, %v1779
        %s1785 = scalar_lea.vmem %s9, 12
        %v1786 = vld [vmem:[%s1785] sm:$0xf]
        %v1788 = vsel %vm624, %v1784, 0
        %v1791 = vsel %vm687, %v1786, 0
        %1793 = vmatprep.subr.bf16.mxu0 0
        %1794 = vmatpush1.bf16.msra.mxu0 0
        %1795 = vmatprep.subr.bf16.mxu0 0
        %1796 = vmatpush1.bf16.msra.mxu0 0
        %1797 = vmatprep.subr.bf16.mxu0 0
        %1798 = vmatpush1.bf16.msra.mxu0 0
        %1799 = vmatprep.subr.bf16.mxu0 0
        %1800 = vmatpush1.bf16.msra.mxu0 0
        %1801 = vmatprep.subr.bf16.mxu0 0
        %1802 = vmatpush1.bf16.msra.mxu0 0
        %1803 = vmatprep.subr.bf16.mxu0 0
        %1804 = vmatpush1.bf16.msra.mxu0 0
        %1805 = vmatprep.subr.bf16.mxu0 0
        %1806 = vmatpush1.bf16.msra.mxu0 0
        %1807 = vmatprep.subr.bf16.mxu0 0
        %1808 = vmatpush1.bf16.msra.mxu0 %v1791
        %1809 = vmatprep.subr.bf16.mxu0 0
        %1810 = vmatpush2.bf16.msra.mxu0 0
        %1811 = vmatprep.subr.bf16.mxu0 0
        %1812 = vmatpush2.bf16.msra.mxu0 0
        %1813 = vmatprep.subr.bf16.mxu0 0
        %1814 = vmatpush2.bf16.msra.mxu0 0
        %1815 = vmatprep.subr.bf16.mxu0 0
        %1816 = vmatpush2.bf16.msra.mxu0 0
        %1817 = vmatprep.subr.bf16.mxu0 0
        %1818 = vmatpush2.bf16.msra.mxu0 0
        %1819 = vmatprep.subr.bf16.mxu0 0
        %1820 = vmatpush2.bf16.msra.mxu0 0
        %1821 = vmatprep.subr.bf16.mxu0 0
        %1822 = vmatpush2.bf16.msra.mxu0 0
        %1823 = vmatprep.subr.bf16.mxu0 0
        %1824 = vmatpush2.bf16.msra.mxu0 0
        %1825 = vmatprep.mubr.bf16.mxu0 0
        %1826 = vmatmul.mubr.bf16.gmra.mxu0 %v1788
        %v1827 = vpop.f32.mrf.mxu0
        %v1828 = vadd.f32 0.0, %v1827
        %v1829 = vpop.f32.mrf.mxu0
        %v1830 = vpop.f32.mrf.mxu0
        %v1831 = vpop.f32.mrf.mxu0
        %1832 = vdwg.mxu0
        %v1833 = vadd.f32 %v1481, %v1828
        %v1834 = vld [vmem:[%s10] sm:$0x1]
        %v1836 = vlaneseq
        %v1837 = vshrl.u32 %v1836, 7
        %v1838 = vsub.s32 0, %v1837
        %v1839 = vrot.slane %v1834, %v1838
        %v1841 = vadd.f32 %v1833, %v1839
        %1842 = vst.msk [vmem:[%s391] sm:$0xff] %vm400, %v1841
        %s1843 = sand.u32 %s283, 1
        %s1844 = scalar_lea.sflag [#allocation3], %s1843
        %s1845 = sand.u32 %s283, 1
        %s1846 = smul.addr %s1845, 8
        %s1847 = scalar_lea.vmem [#allocation2], %s1846
        // Predicated region
        $region65: #{tpu_custom_call.1} parent=63 // pred_check
          %p1848 = pneg %p293
        $region66: #{tpu_custom_call.1} parent=63 // pred_check_branch
          %1850 = sbr.rel (%p1848) target = $region68
        $region67: #{tpu_custom_call.1} parent=63 // pred_region
          %s1852 = ssub.s32 128, 128
          %1853 = vsyncadd %s1844, %s1852
          %s1854 = sadd.s32 %s30, %s29
          %s1855 = smul.addr %s1854, 128
          %s1856 = scalar_lea.hbm %s11, %s1855
          %s1858 = sshll.u32 %s1847, 4
          %s1859 = int_to_ptr.vmem [resolvable:$true] %s1858
          %1861 = dma.vmem_to_hbm [thread:$0]  %s1859, 128, %s1856, %s1844
        $region68: #{tpu_custom_call.1} parent=63 // pred_fallthru
          _
      $region64: #{tpu_custom_call.1} parent=5 // pred_fallthru
        _
      %p1862 = scmp.le.s32.totalorder 2, %s20
      // Predicated region
      $region69: #{tpu_custom_call.1} parent=5 // pred_check
        %p1863 = pneg %p1862
      $region70: #{tpu_custom_call.1} parent=5 // pred_check_branch
        %1865 = sbr.rel (%p1863) target = $region72
      $region71: #{tpu_custom_call.1} parent=5 // pred_region
        %s1866 = ssub.s32 %s20, 2
        // Predicated region
        $region73: #{tpu_custom_call.1} parent=71 // pred_check
          %p1867 = pneg %p299
        $region74: #{tpu_custom_call.1} parent=71 // pred_check_branch
          %1869 = sbr.rel (%p1867) target = $region76
        $region75: #{tpu_custom_call.1} parent=71 // pred_region
          %s1870 = sand.u32 %s284, 1
          %s1871 = scalar_lea.sflag [#allocation3], %s1870
          %s1872 = sand.u32 %s284, 1
          %s1873 = smul.addr %s1872, 8
          %s1874 = scalar_lea.vmem [#allocation2], %s1873
          %1875 = dma.done %s1871, 128
        $region76: #{tpu_custom_call.1} parent=71 // pred_fallthru
          _
      $region72: #{tpu_custom_call.1} parent=5 // pred_fallthru
        _
    $region6: #{tpu_custom_call.1} parent=1 // loop_footer
      %s24 = sadd.s32 1, %s20
    $region7: #{tpu_custom_call.1} parent=1 // loop_footer_branch
      %19 = sbr.rel target = $region3
    $region8: #{tpu_custom_call.1} parent=1 // loop_exit
      _
    %1876 = vsyncpa [#allocation3], 1
    %s1877 = scalar_lea.sflag [#allocation3], 1
    %1878 = vsyncpa %s1877, 1

</llo_original>
